<compile_context>
chip_gen: v7x
topology: tpu7x:2x2x1
jax: 0.10.0
libtpu: 0.0.40
codegen_flags: <defaults>
</compile_context>

<pallas_src>
import functools

import jax
import jax.numpy as jnp
from jax import lax
from jax.experimental import pallas as pl
from jax.experimental.pallas import tpu as pltpu


def _central_diff_slice(x, axis):
    """(x[i+1] - x[i-1]) along `axis` with zero padding outside (slow fallback)."""
    n = x.shape[axis]
    first = lax.slice_in_dim(x, 1, 2, axis=axis)                   # x[1] - 0
    interior = (lax.slice_in_dim(x, 2, n, axis=axis)
                - lax.slice_in_dim(x, 0, n - 2, axis=axis))
    last = -lax.slice_in_dim(x, n - 2, n - 1, axis=axis)           # 0 - x[n-2]
    return jnp.concatenate([first, interior, last], axis=axis)


def _geo_loss_kernel(pred_ref, gt_ref, out_ref, *, spacing, dc,
                     use_roll_w, use_roll_h):
    """One batch-tile per grid step; accumulates (3, h, w) partial sums.

    out_ref[0, 0] = sum over tile of eikonal per-voxel loss
    out_ref[0, 1] = sum over tile of cos_sim * surface_mask
    out_ref[0, 2] = sum over tile of surface_mask
    """
    nt, d, h, w = pred_ref.shape
    denom = 2.0 * spacing
    inv_denom = 1.0 / denom
    # Reference normalises by (||grad|| + 1e-8) on /denom-scaled gradients; on
    # unscaled diffs the matching epsilon inside the rsqrt is (1e-8*denom)^2.
    # (Not bit-identical to the reference for near-flat voxels; documented.)
    eps_sq = (1e-8 * denom) ** 2
    band = 2.0 * spacing

    # 0/1 masks reproducing conv3d zero padding at the W (lane) / H (sublane)
    # boundaries; computed once per grid step, reused by every chunk.
    if use_roll_w:
        lane = lax.broadcasted_iota(jnp.int32, (h, w), 1)
        w_hi = (lane < (w - 1)).astype(jnp.float32)   # keeps x[..., w+1]
        w_lo = (lane > 0).astype(jnp.float32)         # keeps x[..., w-1]
    if use_roll_h:
        sub = lax.broadcasted_iota(jnp.int32, (h, w), 0)
        h_hi = (sub < (h - 1)).astype(jnp.float32)
        h_lo = (sub > 0).astype(jnp.float32)

    def lane_diff(x):   # x: (k, h, w)
        if use_roll_w:
            return (pltpu.roll(x, w - 1, axis=2) * w_hi
                    - pltpu.roll(x, 1, axis=2) * w_lo)
        return _central_diff_slice(x, axis=2)

    def sub_diff(x):
        if use_roll_h:
            return (pltpu.roll(x, h - 1, axis=1) * h_hi
                    - pltpu.roll(x, 1, axis=1) * h_lo)
        return _central_diff_slice(x, axis=1)

    def ld(ref, b, lo, hi):
        # Load a D-slab range in native dtype and upcast in-register.
        return ref[b, lo:hi].astype(jnp.float32)

    def accumulate(pc, gc, pdd, gdd):
        """pc/gc: (k,h,w) center slabs; pdd/gdd: unscaled D-axis diffs."""
        pw_ = lane_diff(pc)
        ph_ = sub_diff(pc)
        gw_ = lane_diff(gc)
        gh_ = sub_diff(gc)
        psq = pw_ * pw_ + pdd * pdd + ph_ * ph_
        gsq = gw_ * gw_ + gdd * gdd + gh_ * gh_
        dot = pw_ * gw_ + pdd * gdd + ph_ * gh_
        inv_p = lax.rsqrt(psq + eps_sq)          # EUP
        inv_g = lax.rsqrt(gsq + eps_sq)          # EUP
        pred_norm = psq * inv_p * inv_denom      # ||grad s_pred|| / (2*spacing)
        eik = (pred_norm - 1.0) ** 2
        cos = dot * (inv_p * inv_g)              # scale-invariant cosine
        maskf = (jnp.abs(gc) < band).astype(jnp.float32)
        # Reduce only over the leading (non-lane/sublane) axis -> pure VPU adds.
        out_ref[0, 0] += jnp.sum(eik, axis=0)
        out_ref[0, 1] += jnp.sum(cos * maskf, axis=0)
        out_ref[0, 2] += jnp.sum(maskf, axis=0)

    out_ref[...] = jnp.zeros_like(out_ref)

    for b in range(nt):
        # D boundary slabs: one-sided diff x[1] (resp. -x[d-2]); the sign
        # cancels in all squares / products, so pass the neighbour directly.
        accumulate(ld(pred_ref, b, 0, 1), ld(gt_ref, b, 0, 1),
                   ld(pred_ref, b, 1, 2), ld(gt_ref, b, 1, 2))
        accumulate(ld(pred_ref, b, d - 1, d), ld(gt_ref, b, d - 1, d),
                   ld(pred_ref, b, d - 2, d - 1), ld(gt_ref, b, d - 2, d - 1))
        # Interior slabs in dc-sized chunks, shifted slabs read straight from
        # the VMEM input refs (exact static slices, no concat copies).
        for lo in range(1, d - 1, dc):
            hi = min(lo + dc, d - 1)
            pdd = ld(pred_ref, b, lo + 1, hi + 1) - ld(pred_ref, b, lo - 1, hi - 1)
            gdd = ld(gt_ref, b, lo + 1, hi + 1) - ld(gt_ref, b, lo - 1, hi - 1)
            accumulate(ld(pred_ref, b, lo, hi), ld(gt_ref, b, lo, hi), pdd, gdd)


def combined_geometric_loss(s_pred_grid, s_gt_grid, spacing=1.0, num_samples=None):
    """JAX/Pallas equivalent of CombinedGeometricLoss.forward (num_samples=None path)."""
    # TODO(synk): the torch.randint-based stochastic subsampling (num_samples)
    # path is a nondeterministic data-dependent gather; only the full-grid
    # path is implemented.
    assert num_samples is None
    n, c, d, h, w = s_pred_grid.shape
    assert c == 1 and d >= 2

    pred = s_pred_grid.reshape(n, d, h, w)   # native dtype; cast happens in-kernel
    gt = s_gt_grid.reshape(n, d, h, w)

    itemsize = jnp.dtype(s_pred_grid.dtype).itemsize
    vol_bytes = d * h * w * itemsize
    # ~4 MiB per input block (amortizes the ~0.35us/step overhead, safe on
    # v7x's 64 MiB VMEM); keep >= 2 grid steps whenever n >= 2 so both v7x
    # TensorCores get work on the "parallel" grid axis.
    target_block_bytes = 4 * 1024 * 1024
    max_tile = max(1, min(8, n if n < 2 else n // 2))
    n_tile = 1
    for cand in range(max_tile, 0, -1):
        if n % cand == 0 and cand * vol_bytes <= target_block_bytes:
            n_tile = cand
            break
    num_blocks = n // n_tile
    # TODO(synk): for volumes >= ~96^3 additionally tile D with a one-slab
    # halo (manual DMA) so the per-step working set fits v7x's 64 MiB VMEM.

    # Chunk the in-kernel slab loop so each temporary stays ~<= 256 KiB.
    dc = max(1, min(d, 8, (256 * 1024) // max(1, h * w * 4)))

    # Decoupled per-axis roll conditions; unaligned axes fall back to
    # slice-based shifts (correct, slower).
    use_roll_w = (w % 128 == 0)
    use_roll_h = (h % 8 == 0)

    kern = functools.partial(_geo_loss_kernel, spacing=float(spacing), dc=dc,
                             use_roll_w=use_roll_w, use_roll_h=use_roll_h)

    in_spec = pl.BlockSpec((n_tile, d, h, w), lambda b: (b, 0, 0, 0))
    parts = pl.pallas_call(
        kern,
        out_shape=jax.ShapeDtypeStruct((num_blocks, 3, h, w), jnp.float32),
        grid=(num_blocks,),
        in_specs=[in_spec, in_spec],
        out_specs=pl.BlockSpec((1, 3, h, w), lambda b: (b, 0, 0, 0)),
        compiler_params=pltpu.CompilerParams(
            dimension_semantics=("parallel",),
            vmem_limit_bytes=48 * 1024 * 1024),
    )(pred, gt)

    # Tiny final reductions (f32 partial sums; for >=256^3 grids consider
    # hierarchical accumulation for count precision).
    eik_sum = jnp.sum(parts[:, 0])
    cos_sum = jnp.sum(parts[:, 1])
    cnt = jnp.sum(parts[:, 2])
    eikonal_loss = eik_sum / jnp.float32(n * d * h * w)
    # masked_select(...).mean(); max(cnt, 1) only guards the empty-mask 0/0.
    normal_loss = (cnt - cos_sum) / jnp.maximum(cnt, 1.0)
    return eikonal_loss, normal_loss


def _reference(s_pred_grid, s_gt_grid, spacing=1.0):
    """Pure-JAX mirror of the PyTorch forward (for correctness checking)."""
    denom = 2.0 * spacing

    def grads(x):
        xp = jnp.pad(x[:, 0], ((0, 0), (1, 1), (1, 1), (1, 1)))
        dw = (xp[:, 1:-1, 1:-1, 2:] - xp[:, 1:-1, 1:-1, :-2]) / denom
        dd = (xp[:, 2:, 1:-1, 1:-1] - xp[:, :-2, 1:-1, 1:-1]) / denom
        dh = (xp[:, 1:-1, 2:, 1:-1] - xp[:, 1:-1, :-2, 1:-1]) / denom
        return jnp.stack([dw, dd, dh], axis=1)

    pg = grads(s_pred_grid)
    gg = grads(s_gt_grid)
    pn = jnp.sqrt(jnp.sum(pg * pg, axis=1))
    eik = jnp.mean((pn - 1.0) ** 2)
    mask = jnp.abs(s_gt_grid[:, 0]) < 2 * spacing
    pnorm = pg / (pn[:, None] + 1e-8)
    gnorm = gg / (jnp.sqrt(jnp.sum(gg * gg, axis=1, keepdims=True)) + 1e-8)
    cos = jnp.sum(pnorm * gnorm, axis=1)
    npl = 1.0 - cos
    nl = jnp.sum(jnp.where(mask, npl, 0.0)) / jnp.sum(mask).astype(jnp.float32)
    return eik, nl


if __name__ == "__main__":
    key = jax.random.PRNGKey(0)
    k1, k2 = jax.random.split(key)
    # Small SDF grids; W=128 / H=16 keep the (8,128) vreg tiling lane-dense,
    # N=2 gives a 2-step parallel grid.
    N, C, D, H, W = 2, 1, 8, 16, 128
    s_pred = jax.random.normal(k1, (N, C, D, H, W), dtype=jnp.float32)
    s_gt = jax.random.normal(k2, (N, C, D, H, W), dtype=jnp.float32) * 1.5

    eik, nrm = combined_geometric_loss(s_pred, s_gt, spacing=1.0, num_samples=None)
    eik = jax.block_until_ready(eik)
    nrm = jax.block_until_ready(nrm)

    eik_ref, nrm_ref = _reference(s_pred, s_gt, spacing=1.0)
    assert jnp.allclose(eik, eik_ref, rtol=5e-5, atol=5e-5), (eik, eik_ref)
    assert jnp.allclose(nrm, nrm_ref, rtol=5e-5, atol=5e-5), (nrm, nrm_ref)

    print("KERNEL_OK")
</pallas_src>

<mosaic_0001>
module attributes {stable_mosaic.version = 11 : i64} {
  func.func @_geo_loss_kernel(%arg0: i32, %arg1: memref<1x8x16x128xf32, #tpu.memory_space<vmem>>, %arg2: memref<1x8x16x128xf32, #tpu.memory_space<vmem>>, %arg3: memref<1x3x16x128xf32, #tpu.memory_space<vmem>>) attributes {dimension_semantics = [#tpu.dimension_semantics<parallel>], iteration_bounds = array<i64: 2>, scalar_prefetch = 0 : i64, scratch_operands = 0 : i64, tpu.core_type = #tpu.core_type<tc>, window_params = [{transform_indices = @transform_0, window_bounds = array<i64: 1, 8, 16, 128>}, {transform_indices = @transform_1, window_bounds = array<i64: 1, 8, 16, 128>}, {transform_indices = @transform_2, window_bounds = array<i64: 1, 3, 16, 128>}]} {
    %0 = tpu.iota {dimensions = array<i32: 1>} : vector<16x128xi32>
    %c127_i32 = arith.constant 127 : i32
    %1 = vector.broadcast %c127_i32 : i32 to vector<16x128xi32>
    %2 = arith.cmpi slt, %0, %1 : vector<16x128xi32>
    %3 = arith.extui %2 : vector<16x128xi1> to vector<16x128xi32>
    %4 = arith.sitofp %3 : vector<16x128xi32> to vector<16x128xf32>
    %c0_i32 = arith.constant 0 : i32
    %5 = vector.broadcast %c0_i32 : i32 to vector<16x128xi32>
    %6 = arith.cmpi sgt, %0, %5 : vector<16x128xi32>
    %7 = arith.extui %6 : vector<16x128xi1> to vector<16x128xi32>
    %8 = arith.sitofp %7 : vector<16x128xi32> to vector<16x128xf32>
    %9 = tpu.iota {dimensions = array<i32: 0>} : vector<16x128xi32>
    %c15_i32 = arith.constant 15 : i32
    %10 = vector.broadcast %c15_i32 : i32 to vector<16x128xi32>
    %11 = arith.cmpi slt, %9, %10 : vector<16x128xi32>
    %12 = arith.extui %11 : vector<16x128xi1> to vector<16x128xi32>
    %13 = arith.sitofp %12 : vector<16x128xi32> to vector<16x128xf32>
    %c0_i32_0 = arith.constant 0 : i32
    %14 = vector.broadcast %c0_i32_0 : i32 to vector<16x128xi32>
    %15 = arith.cmpi sgt, %9, %14 : vector<16x128xi32>
    %16 = arith.extui %15 : vector<16x128xi1> to vector<16x128xi32>
    %17 = arith.sitofp %16 : vector<16x128xi32> to vector<16x128xf32>
    %cst = arith.constant 0.000000e+00 : f32
    %18 = vector.broadcast %cst : f32 to vector<1x3x16x128xf32>
    %c0 = arith.constant 0 : index
    %c0_1 = arith.constant 0 : index
    %c0_2 = arith.constant 0 : index
    %c0_3 = arith.constant 0 : index
    %19 = vector.load %arg3[%c0, %c0_1, %c0_2, %c0_3] : memref<1x3x16x128xf32, #tpu.memory_space<vmem>>, vector<1x3x16x128xf32>
    tpu.vector_store %arg3[%c0, %c0_1, %c0_2, %c0_3], %18 {strides = array<i32>} : memref<1x3x16x128xf32, #tpu.memory_space<vmem>>, vector<1x3x16x128xf32>,
    %c0_4 = arith.constant 0 : index
    %c0_5 = arith.constant 0 : index
    %c0_6 = arith.constant 0 : index
    %c0_7 = arith.constant 0 : index
    %20 = vector.load %arg1[%c0_4, %c0_5, %c0_6, %c0_7] : memref<1x8x16x128xf32, #tpu.memory_space<vmem>>, vector<1x1x16x128xf32>
    %21 = vector.shape_cast %20 : vector<1x1x16x128xf32> to vector<1x16x128xf32>
    %c0_8 = arith.constant 0 : index
    %c0_9 = arith.constant 0 : index
    %c0_10 = arith.constant 0 : index
    %c0_11 = arith.constant 0 : index
    %22 = vector.load %arg2[%c0_8, %c0_9, %c0_10, %c0_11] : memref<1x8x16x128xf32, #tpu.memory_space<vmem>>, vector<1x1x16x128xf32>
    %23 = vector.shape_cast %22 : vector<1x1x16x128xf32> to vector<1x16x128xf32>
    %c0_12 = arith.constant 0 : index
    %c1 = arith.constant 1 : index
    %c0_13 = arith.constant 0 : index
    %c0_14 = arith.constant 0 : index
    %24 = vector.load %arg1[%c0_12, %c1, %c0_13, %c0_14] : memref<1x8x16x128xf32, #tpu.memory_space<vmem>>, vector<1x1x16x128xf32>
    %25 = vector.shape_cast %24 : vector<1x1x16x128xf32> to vector<1x16x128xf32>
    %c0_15 = arith.constant 0 : index
    %c1_16 = arith.constant 1 : index
    %c0_17 = arith.constant 0 : index
    %c0_18 = arith.constant 0 : index
    %26 = vector.load %arg2[%c0_15, %c1_16, %c0_17, %c0_18] : memref<1x8x16x128xf32, #tpu.memory_space<vmem>>, vector<1x1x16x128xf32>
    %27 = vector.shape_cast %26 : vector<1x1x16x128xf32> to vector<1x16x128xf32>
    %c127_i32_19 = arith.constant 127 : i32
    %28 = tpu.dynamic_rotate %21 by %c127_i32_19 dim 2 : vector<1x16x128xf32>, i32 -> vector<1x16x128xf32>
    %29 = vector.shape_cast %4 : vector<16x128xf32> to vector<1x16x128xf32>
    %30 = arith.mulf %28, %29 : vector<1x16x128xf32>
    %c1_i32 = arith.constant 1 : i32
    %31 = tpu.dynamic_rotate %21 by %c1_i32 dim 2 : vector<1x16x128xf32>, i32 -> vector<1x16x128xf32>
    %32 = vector.shape_cast %8 : vector<16x128xf32> to vector<1x16x128xf32>
    %33 = arith.mulf %31, %32 : vector<1x16x128xf32>
    %34 = arith.subf %30, %33 : vector<1x16x128xf32>
    %c15_i32_20 = arith.constant 15 : i32
    %35 = tpu.dynamic_rotate %21 by %c15_i32_20 dim 1 : vector<1x16x128xf32>, i32 -> vector<1x16x128xf32>
    %36 = vector.shape_cast %13 : vector<16x128xf32> to vector<1x16x128xf32>
    %37 = arith.mulf %35, %36 : vector<1x16x128xf32>
    %c1_i32_21 = arith.constant 1 : i32
    %38 = tpu.dynamic_rotate %21 by %c1_i32_21 dim 1 : vector<1x16x128xf32>, i32 -> vector<1x16x128xf32>
    %39 = vector.shape_cast %17 : vector<16x128xf32> to vector<1x16x128xf32>
    %40 = arith.mulf %38, %39 : vector<1x16x128xf32>
    %41 = arith.subf %37, %40 : vector<1x16x128xf32>
    %c127_i32_22 = arith.constant 127 : i32
    %42 = tpu.dynamic_rotate %23 by %c127_i32_22 dim 2 : vector<1x16x128xf32>, i32 -> vector<1x16x128xf32>
    %43 = vector.shape_cast %4 : vector<16x128xf32> to vector<1x16x128xf32>
    %44 = arith.mulf %42, %43 : vector<1x16x128xf32>
    %c1_i32_23 = arith.constant 1 : i32
    %45 = tpu.dynamic_rotate %23 by %c1_i32_23 dim 2 : vector<1x16x128xf32>, i32 -> vector<1x16x128xf32>
    %46 = vector.shape_cast %8 : vector<16x128xf32> to vector<1x16x128xf32>
    %47 = arith.mulf %45, %46 : vector<1x16x128xf32>
    %48 = arith.subf %44, %47 : vector<1x16x128xf32>
    %c15_i32_24 = arith.constant 15 : i32
    %49 = tpu.dynamic_rotate %23 by %c15_i32_24 dim 1 : vector<1x16x128xf32>, i32 -> vector<1x16x128xf32>
    %50 = vector.shape_cast %13 : vector<16x128xf32> to vector<1x16x128xf32>
    %51 = arith.mulf %49, %50 : vector<1x16x128xf32>
    %c1_i32_25 = arith.constant 1 : i32
    %52 = tpu.dynamic_rotate %23 by %c1_i32_25 dim 1 : vector<1x16x128xf32>, i32 -> vector<1x16x128xf32>
    %53 = vector.shape_cast %17 : vector<16x128xf32> to vector<1x16x128xf32>
    %54 = arith.mulf %52, %53 : vector<1x16x128xf32>
    %55 = arith.subf %51, %54 : vector<1x16x128xf32>
    %56 = arith.mulf %34, %34 : vector<1x16x128xf32>
    %57 = arith.mulf %25, %25 : vector<1x16x128xf32>
    %58 = arith.addf %56, %57 : vector<1x16x128xf32>
    %59 = arith.mulf %41, %41 : vector<1x16x128xf32>
    %60 = arith.addf %58, %59 : vector<1x16x128xf32>
    %61 = arith.mulf %48, %48 : vector<1x16x128xf32>
    %62 = arith.mulf %27, %27 : vector<1x16x128xf32>
    %63 = arith.addf %61, %62 : vector<1x16x128xf32>
    %64 = arith.mulf %55, %55 : vector<1x16x128xf32>
    %65 = arith.addf %63, %64 : vector<1x16x128xf32>
    %66 = arith.mulf %34, %48 : vector<1x16x128xf32>
    %67 = arith.mulf %25, %27 : vector<1x16x128xf32>
    %68 = arith.addf %66, %67 : vector<1x16x128xf32>
    %69 = arith.mulf %41, %55 : vector<1x16x128xf32>
    %70 = arith.addf %68, %69 : vector<1x16x128xf32>
    %cst_26 = arith.constant 4.000000e-16 : f32
    %71 = vector.broadcast %cst_26 : f32 to vector<1x16x128xf32>
    %72 = arith.addf %60, %71 : vector<1x16x128xf32>
    %73 = math.rsqrt %72 : vector<1x16x128xf32>
    %cst_27 = arith.constant 4.000000e-16 : f32
    %74 = vector.broadcast %cst_27 : f32 to vector<1x16x128xf32>
    %75 = arith.addf %65, %74 : vector<1x16x128xf32>
    %76 = math.rsqrt %75 : vector<1x16x128xf32>
    %77 = arith.mulf %60, %73 : vector<1x16x128xf32>
    %cst_28 = arith.constant 5.000000e-01 : f32
    %78 = vector.broadcast %cst_28 : f32 to vector<1x16x128xf32>
    %79 = arith.mulf %77, %78 : vector<1x16x128xf32>
    %cst_29 = arith.constant 1.000000e+00 : f32
    %80 = vector.broadcast %cst_29 : f32 to vector<1x16x128xf32>
    %81 = arith.subf %79, %80 : vector<1x16x128xf32>
    %82 = arith.mulf %81, %81 : vector<1x16x128xf32>
    %83 = arith.mulf %73, %76 : vector<1x16x128xf32>
    %84 = arith.mulf %70, %83 : vector<1x16x128xf32>
    %85 = math.absf %23 : vector<1x16x128xf32>
    %cst_30 = arith.constant 2.000000e+00 : f32
    %86 = vector.broadcast %cst_30 : f32 to vector<1x16x128xf32>
    %87 = arith.cmpf olt, %85, %86 : vector<1x16x128xf32>
    %88 = arith.extui %87 : vector<1x16x128xi1> to vector<1x16x128xi32>
    %89 = arith.sitofp %88 : vector<1x16x128xi32> to vector<1x16x128xf32>
    %c0_31 = arith.constant 0 : index
    %c0_32 = arith.constant 0 : index
    %c0_33 = arith.constant 0 : index
    %c0_34 = arith.constant 0 : index
    %90 = vector.load %arg3[%c0_31, %c0_32, %c0_33, %c0_34] : memref<1x3x16x128xf32, #tpu.memory_space<vmem>>, vector<1x1x16x128xf32>
    %91 = vector.shape_cast %90 : vector<1x1x16x128xf32> to vector<16x128xf32>
    %cst_35 = arith.constant dense<0.000000e+00> : vector<16x128xf32>
    %92 = vector.multi_reduction <add>, %82, %cst_35 [0] : vector<1x16x128xf32> to vector<16x128xf32>
    %93 = arith.addf %91, %92 : vector<16x128xf32>
    %c0_36 = arith.constant 0 : index
    %c0_37 = arith.constant 0 : index
    %c0_38 = arith.constant 0 : index
    %c0_39 = arith.constant 0 : index
    %94 = vector.load %arg3[%c0_36, %c0_37, %c0_38, %c0_39] : memref<1x3x16x128xf32, #tpu.memory_space<vmem>>, vector<1x1x16x128xf32>
    %95 = vector.shape_cast %94 : vector<1x1x16x128xf32> to vector<16x128xf32>
    %96 = vector.shape_cast %93 : vector<16x128xf32> to vector<1x1x16x128xf32>
    tpu.vector_store %arg3[%c0_36, %c0_37, %c0_38, %c0_39], %96 {strides = array<i32>} : memref<1x3x16x128xf32, #tpu.memory_space<vmem>>, vector<1x1x16x128xf32>,
    %c0_40 = arith.constant 0 : index
    %c1_41 = arith.constant 1 : index
    %c0_42 = arith.constant 0 : index
    %c0_43 = arith.constant 0 : index
    %97 = vector.load %arg3[%c0_40, %c1_41, %c0_42, %c0_43] : memref<1x3x16x128xf32, #tpu.memory_space<vmem>>, vector<1x1x16x128xf32>
    %98 = vector.shape_cast %97 : vector<1x1x16x128xf32> to vector<16x128xf32>
    %99 = arith.mulf %84, %89 : vector<1x16x128xf32>
    %cst_44 = arith.constant dense<0.000000e+00> : vector<16x128xf32>
    %100 = vector.multi_reduction <add>, %99, %cst_44 [0] : vector<1x16x128xf32> to vector<16x128xf32>
    %101 = arith.addf %98, %100 : vector<16x128xf32>
    %c0_45 = arith.constant 0 : index
    %c1_46 = arith.constant 1 : index
    %c0_47 = arith.constant 0 : index
    %c0_48 = arith.constant 0 : index
    %102 = vector.load %arg3[%c0_45, %c1_46, %c0_47, %c0_48] : memref<1x3x16x128xf32, #tpu.memory_space<vmem>>, vector<1x1x16x128xf32>
    %103 = vector.shape_cast %102 : vector<1x1x16x128xf32> to vector<16x128xf32>
    %104 = vector.shape_cast %101 : vector<16x128xf32> to vector<1x1x16x128xf32>
    tpu.vector_store %arg3[%c0_45, %c1_46, %c0_47, %c0_48], %104 {strides = array<i32>} : memref<1x3x16x128xf32, #tpu.memory_space<vmem>>, vector<1x1x16x128xf32>,
    %c0_49 = arith.constant 0 : index
    %c2 = arith.constant 2 : index
    %c0_50 = arith.constant 0 : index
    %c0_51 = arith.constant 0 : index
    %105 = vector.load %arg3[%c0_49, %c2, %c0_50, %c0_51] : memref<1x3x16x128xf32, #tpu.memory_space<vmem>>, vector<1x1x16x128xf32>
    %106 = vector.shape_cast %105 : vector<1x1x16x128xf32> to vector<16x128xf32>
    %cst_52 = arith.constant dense<0.000000e+00> : vector<16x128xf32>
    %107 = vector.multi_reduction <add>, %89, %cst_52 [0] : vector<1x16x128xf32> to vector<16x128xf32>
    %108 = arith.addf %106, %107 : vector<16x128xf32>
    %c0_53 = arith.constant 0 : index
    %c2_54 = arith.constant 2 : index
    %c0_55 = arith.constant 0 : index
    %c0_56 = arith.constant 0 : index
    %109 = vector.load %arg3[%c0_53, %c2_54, %c0_55, %c0_56] : memref<1x3x16x128xf32, #tpu.memory_space<vmem>>, vector<1x1x16x128xf32>
    %110 = vector.shape_cast %109 : vector<1x1x16x128xf32> to vector<16x128xf32>
    %111 = vector.shape_cast %108 : vector<16x128xf32> to vector<1x1x16x128xf32>
    tpu.vector_store %arg3[%c0_53, %c2_54, %c0_55, %c0_56], %111 {strides = array<i32>} : memref<1x3x16x128xf32, #tpu.memory_space<vmem>>, vector<1x1x16x128xf32>,
    %c0_57 = arith.constant 0 : index
    %c7 = arith.constant 7 : index
    %c0_58 = arith.constant 0 : index
    %c0_59 = arith.constant 0 : index
    %112 = vector.load %arg1[%c0_57, %c7, %c0_58, %c0_59] : memref<1x8x16x128xf32, #tpu.memory_space<vmem>>, vector<1x1x16x128xf32>
    %113 = vector.shape_cast %112 : vector<1x1x16x128xf32> to vector<1x16x128xf32>
    %c0_60 = arith.constant 0 : index
    %c7_61 = arith.constant 7 : index
    %c0_62 = arith.constant 0 : index
    %c0_63 = arith.constant 0 : index
    %114 = vector.load %arg2[%c0_60, %c7_61, %c0_62, %c0_63] : memref<1x8x16x128xf32, #tpu.memory_space<vmem>>, vector<1x1x16x128xf32>
    %115 = vector.shape_cast %114 : vector<1x1x16x128xf32> to vector<1x16x128xf32>
    %c0_64 = arith.constant 0 : index
    %c6 = arith.constant 6 : index
    %c0_65 = arith.constant 0 : index
    %c0_66 = arith.constant 0 : index
    %116 = vector.load %arg1[%c0_64, %c6, %c0_65, %c0_66] : memref<1x8x16x128xf32, #tpu.memory_space<vmem>>, vector<1x1x16x128xf32>
    %117 = vector.shape_cast %116 : vector<1x1x16x128xf32> to vector<1x16x128xf32>
    %c0_67 = arith.constant 0 : index
    %c6_68 = arith.constant 6 : index
    %c0_69 = arith.constant 0 : index
    %c0_70 = arith.constant 0 : index
    %118 = vector.load %arg2[%c0_67, %c6_68, %c0_69, %c0_70] : memref<1x8x16x128xf32, #tpu.memory_space<vmem>>, vector<1x1x16x128xf32>
    %119 = vector.shape_cast %118 : vector<1x1x16x128xf32> to vector<1x16x128xf32>
    %c127_i32_71 = arith.constant 127 : i32
    %120 = tpu.dynamic_rotate %113 by %c127_i32_71 dim 2 : vector<1x16x128xf32>, i32 -> vector<1x16x128xf32>
    %121 = vector.shape_cast %4 : vector<16x128xf32> to vector<1x16x128xf32>
    %122 = arith.mulf %120, %121 : vector<1x16x128xf32>
    %c1_i32_72 = arith.constant 1 : i32
    %123 = tpu.dynamic_rotate %113 by %c1_i32_72 dim 2 : vector<1x16x128xf32>, i32 -> vector<1x16x128xf32>
    %124 = vector.shape_cast %8 : vector<16x128xf32> to vector<1x16x128xf32>
    %125 = arith.mulf %123, %124 : vector<1x16x128xf32>
    %126 = arith.subf %122, %125 : vector<1x16x128xf32>
    %c15_i32_73 = arith.constant 15 : i32
    %127 = tpu.dynamic_rotate %113 by %c15_i32_73 dim 1 : vector<1x16x128xf32>, i32 -> vector<1x16x128xf32>
    %128 = vector.shape_cast %13 : vector<16x128xf32> to vector<1x16x128xf32>
    %129 = arith.mulf %127, %128 : vector<1x16x128xf32>
    %c1_i32_74 = arith.constant 1 : i32
    %130 = tpu.dynamic_rotate %113 by %c1_i32_74 dim 1 : vector<1x16x128xf32>, i32 -> vector<1x16x128xf32>
    %131 = vector.shape_cast %17 : vector<16x128xf32> to vector<1x16x128xf32>
    %132 = arith.mulf %130, %131 : vector<1x16x128xf32>
    %133 = arith.subf %129, %132 : vector<1x16x128xf32>
    %c127_i32_75 = arith.constant 127 : i32
    %134 = tpu.dynamic_rotate %115 by %c127_i32_75 dim 2 : vector<1x16x128xf32>, i32 -> vector<1x16x128xf32>
    %135 = vector.shape_cast %4 : vector<16x128xf32> to vector<1x16x128xf32>
    %136 = arith.mulf %134, %135 : vector<1x16x128xf32>
    %c1_i32_76 = arith.constant 1 : i32
    %137 = tpu.dynamic_rotate %115 by %c1_i32_76 dim 2 : vector<1x16x128xf32>, i32 -> vector<1x16x128xf32>
    %138 = vector.shape_cast %8 : vector<16x128xf32> to vector<1x16x128xf32>
    %139 = arith.mulf %137, %138 : vector<1x16x128xf32>
    %140 = arith.subf %136, %139 : vector<1x16x128xf32>
    %c15_i32_77 = arith.constant 15 : i32
    %141 = tpu.dynamic_rotate %115 by %c15_i32_77 dim 1 : vector<1x16x128xf32>, i32 -> vector<1x16x128xf32>
    %142 = vector.shape_cast %13 : vector<16x128xf32> to vector<1x16x128xf32>
    %143 = arith.mulf %141, %142 : vector<1x16x128xf32>
    %c1_i32_78 = arith.constant 1 : i32
    %144 = tpu.dynamic_rotate %115 by %c1_i32_78 dim 1 : vector<1x16x128xf32>, i32 -> vector<1x16x128xf32>
    %145 = vector.shape_cast %17 : vector<16x128xf32> to vector<1x16x128xf32>
    %146 = arith.mulf %144, %145 : vector<1x16x128xf32>
    %147 = arith.subf %143, %146 : vector<1x16x128xf32>
    %148 = arith.mulf %126, %126 : vector<1x16x128xf32>
    %149 = arith.mulf %117, %117 : vector<1x16x128xf32>
    %150 = arith.addf %148, %149 : vector<1x16x128xf32>
    %151 = arith.mulf %133, %133 : vector<1x16x128xf32>
    %152 = arith.addf %150, %151 : vector<1x16x128xf32>
    %153 = arith.mulf %140, %140 : vector<1x16x128xf32>
    %154 = arith.mulf %119, %119 : vector<1x16x128xf32>
    %155 = arith.addf %153, %154 : vector<1x16x128xf32>
    %156 = arith.mulf %147, %147 : vector<1x16x128xf32>
    %157 = arith.addf %155, %156 : vector<1x16x128xf32>
    %158 = arith.mulf %126, %140 : vector<1x16x128xf32>
    %159 = arith.mulf %117, %119 : vector<1x16x128xf32>
    %160 = arith.addf %158, %159 : vector<1x16x128xf32>
    %161 = arith.mulf %133, %147 : vector<1x16x128xf32>
    %162 = arith.addf %160, %161 : vector<1x16x128xf32>
    %cst_79 = arith.constant 4.000000e-16 : f32
    %163 = vector.broadcast %cst_79 : f32 to vector<1x16x128xf32>
    %164 = arith.addf %152, %163 : vector<1x16x128xf32>
    %165 = math.rsqrt %164 : vector<1x16x128xf32>
    %cst_80 = arith.constant 4.000000e-16 : f32
    %166 = vector.broadcast %cst_80 : f32 to vector<1x16x128xf32>
    %167 = arith.addf %157, %166 : vector<1x16x128xf32>
    %168 = math.rsqrt %167 : vector<1x16x128xf32>
    %169 = arith.mulf %152, %165 : vector<1x16x128xf32>
    %cst_81 = arith.constant 5.000000e-01 : f32
    %170 = vector.broadcast %cst_81 : f32 to vector<1x16x128xf32>
    %171 = arith.mulf %169, %170 : vector<1x16x128xf32>
    %cst_82 = arith.constant 1.000000e+00 : f32
    %172 = vector.broadcast %cst_82 : f32 to vector<1x16x128xf32>
    %173 = arith.subf %171, %172 : vector<1x16x128xf32>
    %174 = arith.mulf %173, %173 : vector<1x16x128xf32>
    %175 = arith.mulf %165, %168 : vector<1x16x128xf32>
    %176 = arith.mulf %162, %175 : vector<1x16x128xf32>
    %177 = math.absf %115 : vector<1x16x128xf32>
    %cst_83 = arith.constant 2.000000e+00 : f32
    %178 = vector.broadcast %cst_83 : f32 to vector<1x16x128xf32>
    %179 = arith.cmpf olt, %177, %178 : vector<1x16x128xf32>
    %180 = arith.extui %179 : vector<1x16x128xi1> to vector<1x16x128xi32>
    %181 = arith.sitofp %180 : vector<1x16x128xi32> to vector<1x16x128xf32>
    %c0_84 = arith.constant 0 : index
    %c0_85 = arith.constant 0 : index
    %c0_86 = arith.constant 0 : index
    %c0_87 = arith.constant 0 : index
    %182 = vector.load %arg3[%c0_84, %c0_85, %c0_86, %c0_87] : memref<1x3x16x128xf32, #tpu.memory_space<vmem>>, vector<1x1x16x128xf32>
    %183 = vector.shape_cast %182 : vector<1x1x16x128xf32> to vector<16x128xf32>
    %cst_88 = arith.constant dense<0.000000e+00> : vector<16x128xf32>
    %184 = vector.multi_reduction <add>, %174, %cst_88 [0] : vector<1x16x128xf32> to vector<16x128xf32>
    %185 = arith.addf %183, %184 : vector<16x128xf32>
    %c0_89 = arith.constant 0 : index
    %c0_90 = arith.constant 0 : index
    %c0_91 = arith.constant 0 : index
    %c0_92 = arith.constant 0 : index
    %186 = vector.load %arg3[%c0_89, %c0_90, %c0_91, %c0_92] : memref<1x3x16x128xf32, #tpu.memory_space<vmem>>, vector<1x1x16x128xf32>
    %187 = vector.shape_cast %186 : vector<1x1x16x128xf32> to vector<16x128xf32>
    %188 = vector.shape_cast %185 : vector<16x128xf32> to vector<1x1x16x128xf32>
    tpu.vector_store %arg3[%c0_89, %c0_90, %c0_91, %c0_92], %188 {strides = array<i32>} : memref<1x3x16x128xf32, #tpu.memory_space<vmem>>, vector<1x1x16x128xf32>,
    %c0_93 = arith.constant 0 : index
    %c1_94 = arith.constant 1 : index
    %c0_95 = arith.constant 0 : index
    %c0_96 = arith.constant 0 : index
    %189 = vector.load %arg3[%c0_93, %c1_94, %c0_95, %c0_96] : memref<1x3x16x128xf32, #tpu.memory_space<vmem>>, vector<1x1x16x128xf32>
    %190 = vector.shape_cast %189 : vector<1x1x16x128xf32> to vector<16x128xf32>
    %191 = arith.mulf %176, %181 : vector<1x16x128xf32>
    %cst_97 = arith.constant dense<0.000000e+00> : vector<16x128xf32>
    %192 = vector.multi_reduction <add>, %191, %cst_97 [0] : vector<1x16x128xf32> to vector<16x128xf32>
    %193 = arith.addf %190, %192 : vector<16x128xf32>
    %c0_98 = arith.constant 0 : index
    %c1_99 = arith.constant 1 : index
    %c0_100 = arith.constant 0 : index
    %c0_101 = arith.constant 0 : index
    %194 = vector.load %arg3[%c0_98, %c1_99, %c0_100, %c0_101] : memref<1x3x16x128xf32, #tpu.memory_space<vmem>>, vector<1x1x16x128xf32>
    %195 = vector.shape_cast %194 : vector<1x1x16x128xf32> to vector<16x128xf32>
    %196 = vector.shape_cast %193 : vector<16x128xf32> to vector<1x1x16x128xf32>
    tpu.vector_store %arg3[%c0_98, %c1_99, %c0_100, %c0_101], %196 {strides = array<i32>} : memref<1x3x16x128xf32, #tpu.memory_space<vmem>>, vector<1x1x16x128xf32>,
    %c0_102 = arith.constant 0 : index
    %c2_103 = arith.constant 2 : index
    %c0_104 = arith.constant 0 : index
    %c0_105 = arith.constant 0 : index
    %197 = vector.load %arg3[%c0_102, %c2_103, %c0_104, %c0_105] : memref<1x3x16x128xf32, #tpu.memory_space<vmem>>, vector<1x1x16x128xf32>
    %198 = vector.shape_cast %197 : vector<1x1x16x128xf32> to vector<16x128xf32>
    %cst_106 = arith.constant dense<0.000000e+00> : vector<16x128xf32>
    %199 = vector.multi_reduction <add>, %181, %cst_106 [0] : vector<1x16x128xf32> to vector<16x128xf32>
    %200 = arith.addf %198, %199 : vector<16x128xf32>
    %c0_107 = arith.constant 0 : index
    %c2_108 = arith.constant 2 : index
    %c0_109 = arith.constant 0 : index
    %c0_110 = arith.constant 0 : index
    %201 = vector.load %arg3[%c0_107, %c2_108, %c0_109, %c0_110] : memref<1x3x16x128xf32, #tpu.memory_space<vmem>>, vector<1x1x16x128xf32>
    %202 = vector.shape_cast %201 : vector<1x1x16x128xf32> to vector<16x128xf32>
    %203 = vector.shape_cast %200 : vector<16x128xf32> to vector<1x1x16x128xf32>
    tpu.vector_store %arg3[%c0_107, %c2_108, %c0_109, %c0_110], %203 {strides = array<i32>} : memref<1x3x16x128xf32, #tpu.memory_space<vmem>>, vector<1x1x16x128xf32>,
    %c0_111 = arith.constant 0 : index
    %c2_112 = arith.constant 2 : index
    %c0_113 = arith.constant 0 : index
    %c0_114 = arith.constant 0 : index
    %204 = vector.load %arg1[%c0_111, %c2_112, %c0_113, %c0_114] : memref<1x8x16x128xf32, #tpu.memory_space<vmem>>, vector<1x6x16x128xf32>
    %205 = vector.shape_cast %204 : vector<1x6x16x128xf32> to vector<6x16x128xf32>
    %c0_115 = arith.constant 0 : index
    %c0_116 = arith.constant 0 : index
    %c0_117 = arith.constant 0 : index
    %c0_118 = arith.constant 0 : index
    %206 = vector.load %arg1[%c0_115, %c0_116, %c0_117, %c0_118] : memref<1x8x16x128xf32, #tpu.memory_space<vmem>>, vector<1x6x16x128xf32>
    %207 = vector.shape_cast %206 : vector<1x6x16x128xf32> to vector<6x16x128xf32>
    %208 = arith.subf %205, %207 : vector<6x16x128xf32>
    %c0_119 = arith.constant 0 : index
    %c2_120 = arith.constant 2 : index
    %c0_121 = arith.constant 0 : index
    %c0_122 = arith.constant 0 : index
    %209 = vector.load %arg2[%c0_119, %c2_120, %c0_121, %c0_122] : memref<1x8x16x128xf32, #tpu.memory_space<vmem>>, vector<1x6x16x128xf32>
    %210 = vector.shape_cast %209 : vector<1x6x16x128xf32> to vector<6x16x128xf32>
    %c0_123 = arith.constant 0 : index
    %c0_124 = arith.constant 0 : index
    %c0_125 = arith.constant 0 : index
    %c0_126 = arith.constant 0 : index
    %211 = vector.load %arg2[%c0_123, %c0_124, %c0_125, %c0_126] : memref<1x8x16x128xf32, #tpu.memory_space<vmem>>, vector<1x6x16x128xf32>
    %212 = vector.shape_cast %211 : vector<1x6x16x128xf32> to vector<6x16x128xf32>
    %213 = arith.subf %210, %212 : vector<6x16x128xf32>
    %c0_127 = arith.constant 0 : index
    %c1_128 = arith.constant 1 : index
    %c0_129 = arith.constant 0 : index
    %c0_130 = arith.constant 0 : index
    %214 = vector.load %arg1[%c0_127, %c1_128, %c0_129, %c0_130] : memref<1x8x16x128xf32, #tpu.memory_space<vmem>>, vector<1x6x16x128xf32>
    %215 = vector.shape_cast %214 : vector<1x6x16x128xf32> to vector<6x16x128xf32>
    %c0_131 = arith.constant 0 : index
    %c1_132 = arith.constant 1 : index
    %c0_133 = arith.constant 0 : index
    %c0_134 = arith.constant 0 : index
    %216 = vector.load %arg2[%c0_131, %c1_132, %c0_133, %c0_134] : memref<1x8x16x128xf32, #tpu.memory_space<vmem>>, vector<1x6x16x128xf32>
    %217 = vector.shape_cast %216 : vector<1x6x16x128xf32> to vector<6x16x128xf32>
    %c127_i32_135 = arith.constant 127 : i32
    %218 = tpu.dynamic_rotate %215 by %c127_i32_135 dim 2 : vector<6x16x128xf32>, i32 -> vector<6x16x128xf32>
    %219 = vector.shape_cast %4 : vector<16x128xf32> to vector<1x16x128xf32>
    %220 = vector.broadcast %219 : vector<1x16x128xf32> to vector<6x16x128xf32>
    %221 = arith.mulf %218, %220 : vector<6x16x128xf32>
    %c1_i32_136 = arith.constant 1 : i32
    %222 = tpu.dynamic_rotate %215 by %c1_i32_136 dim 2 : vector<6x16x128xf32>, i32 -> vector<6x16x128xf32>
    %223 = vector.shape_cast %8 : vector<16x128xf32> to vector<1x16x128xf32>
    %224 = vector.broadcast %223 : vector<1x16x128xf32> to vector<6x16x128xf32>
    %225 = arith.mulf %222, %224 : vector<6x16x128xf32>
    %226 = arith.subf %221, %225 : vector<6x16x128xf32>
    %c15_i32_137 = arith.constant 15 : i32
    %227 = tpu.dynamic_rotate %215 by %c15_i32_137 dim 1 : vector<6x16x128xf32>, i32 -> vector<6x16x128xf32>
    %228 = vector.shape_cast %13 : vector<16x128xf32> to vector<1x16x128xf32>
    %229 = vector.broadcast %228 : vector<1x16x128xf32> to vector<6x16x128xf32>
    %230 = arith.mulf %227, %229 : vector<6x16x128xf32>
    %c1_i32_138 = arith.constant 1 : i32
    %231 = tpu.dynamic_rotate %215 by %c1_i32_138 dim 1 : vector<6x16x128xf32>, i32 -> vector<6x16x128xf32>
    %232 = vector.shape_cast %17 : vector<16x128xf32> to vector<1x16x128xf32>
    %233 = vector.broadcast %232 : vector<1x16x128xf32> to vector<6x16x128xf32>
    %234 = arith.mulf %231, %233 : vector<6x16x128xf32>
    %235 = arith.subf %230, %234 : vector<6x16x128xf32>
    %c127_i32_139 = arith.constant 127 : i32
    %236 = tpu.dynamic_rotate %217 by %c127_i32_139 dim 2 : vector<6x16x128xf32>, i32 -> vector<6x16x128xf32>
    %237 = vector.shape_cast %4 : vector<16x128xf32> to vector<1x16x128xf32>
    %238 = vector.broadcast %237 : vector<1x16x128xf32> to vector<6x16x128xf32>
    %239 = arith.mulf %236, %238 : vector<6x16x128xf32>
    %c1_i32_140 = arith.constant 1 : i32
    %240 = tpu.dynamic_rotate %217 by %c1_i32_140 dim 2 : vector<6x16x128xf32>, i32 -> vector<6x16x128xf32>
    %241 = vector.shape_cast %8 : vector<16x128xf32> to vector<1x16x128xf32>
    %242 = vector.broadcast %241 : vector<1x16x128xf32> to vector<6x16x128xf32>
    %243 = arith.mulf %240, %242 : vector<6x16x128xf32>
    %244 = arith.subf %239, %243 : vector<6x16x128xf32>
    %c15_i32_141 = arith.constant 15 : i32
    %245 = tpu.dynamic_rotate %217 by %c15_i32_141 dim 1 : vector<6x16x128xf32>, i32 -> vector<6x16x128xf32>
    %246 = vector.shape_cast %13 : vector<16x128xf32> to vector<1x16x128xf32>
    %247 = vector.broadcast %246 : vector<1x16x128xf32> to vector<6x16x128xf32>
    %248 = arith.mulf %245, %247 : vector<6x16x128xf32>
    %c1_i32_142 = arith.constant 1 : i32
    %249 = tpu.dynamic_rotate %217 by %c1_i32_142 dim 1 : vector<6x16x128xf32>, i32 -> vector<6x16x128xf32>
    %250 = vector.shape_cast %17 : vector<16x128xf32> to vector<1x16x128xf32>
    %251 = vector.broadcast %250 : vector<1x16x128xf32> to vector<6x16x128xf32>
    %252 = arith.mulf %249, %251 : vector<6x16x128xf32>
    %253 = arith.subf %248, %252 : vector<6x16x128xf32>
    %254 = arith.mulf %226, %226 : vector<6x16x128xf32>
    %255 = arith.mulf %208, %208 : vector<6x16x128xf32>
    %256 = arith.addf %254, %255 : vector<6x16x128xf32>
    %257 = arith.mulf %235, %235 : vector<6x16x128xf32>
    %258 = arith.addf %256, %257 : vector<6x16x128xf32>
    %259 = arith.mulf %244, %244 : vector<6x16x128xf32>
    %260 = arith.mulf %213, %213 : vector<6x16x128xf32>
    %261 = arith.addf %259, %260 : vector<6x16x128xf32>
    %262 = arith.mulf %253, %253 : vector<6x16x128xf32>
    %263 = arith.addf %261, %262 : vector<6x16x128xf32>
    %264 = arith.mulf %226, %244 : vector<6x16x128xf32>
    %265 = arith.mulf %208, %213 : vector<6x16x128xf32>
    %266 = arith.addf %264, %265 : vector<6x16x128xf32>
    %267 = arith.mulf %235, %253 : vector<6x16x128xf32>
    %268 = arith.addf %266, %267 : vector<6x16x128xf32>
    %cst_143 = arith.constant 4.000000e-16 : f32
    %269 = vector.broadcast %cst_143 : f32 to vector<6x16x128xf32>
    %270 = arith.addf %258, %269 : vector<6x16x128xf32>
    %271 = math.rsqrt %270 : vector<6x16x128xf32>
    %cst_144 = arith.constant 4.000000e-16 : f32
    %272 = vector.broadcast %cst_144 : f32 to vector<6x16x128xf32>
    %273 = arith.addf %263, %272 : vector<6x16x128xf32>
    %274 = math.rsqrt %273 : vector<6x16x128xf32>
    %275 = arith.mulf %258, %271 : vector<6x16x128xf32>
    %cst_145 = arith.constant 5.000000e-01 : f32
    %276 = vector.broadcast %cst_145 : f32 to vector<6x16x128xf32>
    %277 = arith.mulf %275, %276 : vector<6x16x128xf32>
    %cst_146 = arith.constant 1.000000e+00 : f32
    %278 = vector.broadcast %cst_146 : f32 to vector<6x16x128xf32>
    %279 = arith.subf %277, %278 : vector<6x16x128xf32>
    %280 = arith.mulf %279, %279 : vector<6x16x128xf32>
    %281 = arith.mulf %271, %274 : vector<6x16x128xf32>
    %282 = arith.mulf %268, %281 : vector<6x16x128xf32>
    %283 = math.absf %217 : vector<6x16x128xf32>
    %cst_147 = arith.constant 2.000000e+00 : f32
    %284 = vector.broadcast %cst_147 : f32 to vector<6x16x128xf32>
    %285 = arith.cmpf olt, %283, %284 : vector<6x16x128xf32>
    %286 = arith.extui %285 : vector<6x16x128xi1> to vector<6x16x128xi32>
    %287 = arith.sitofp %286 : vector<6x16x128xi32> to vector<6x16x128xf32>
    %c0_148 = arith.constant 0 : index
    %c0_149 = arith.constant 0 : index
    %c0_150 = arith.constant 0 : index
    %c0_151 = arith.constant 0 : index
    %288 = vector.load %arg3[%c0_148, %c0_149, %c0_150, %c0_151] : memref<1x3x16x128xf32, #tpu.memory_space<vmem>>, vector<1x1x16x128xf32>
    %289 = vector.shape_cast %288 : vector<1x1x16x128xf32> to vector<16x128xf32>
    %cst_152 = arith.constant dense<0.000000e+00> : vector<16x128xf32>
    %290 = vector.multi_reduction <add>, %280, %cst_152 [0] : vector<6x16x128xf32> to vector<16x128xf32>
    %291 = arith.addf %289, %290 : vector<16x128xf32>
    %c0_153 = arith.constant 0 : index
    %c0_154 = arith.constant 0 : index
    %c0_155 = arith.constant 0 : index
    %c0_156 = arith.constant 0 : index
    %292 = vector.load %arg3[%c0_153, %c0_154, %c0_155, %c0_156] : memref<1x3x16x128xf32, #tpu.memory_space<vmem>>, vector<1x1x16x128xf32>
    %293 = vector.shape_cast %292 : vector<1x1x16x128xf32> to vector<16x128xf32>
    %294 = vector.shape_cast %291 : vector<16x128xf32> to vector<1x1x16x128xf32>
    tpu.vector_store %arg3[%c0_153, %c0_154, %c0_155, %c0_156], %294 {strides = array<i32>} : memref<1x3x16x128xf32, #tpu.memory_space<vmem>>, vector<1x1x16x128xf32>,
    %c0_157 = arith.constant 0 : index
    %c1_158 = arith.constant 1 : index
    %c0_159 = arith.constant 0 : index
    %c0_160 = arith.constant 0 : index
    %295 = vector.load %arg3[%c0_157, %c1_158, %c0_159, %c0_160] : memref<1x3x16x128xf32, #tpu.memory_space<vmem>>, vector<1x1x16x128xf32>
    %296 = vector.shape_cast %295 : vector<1x1x16x128xf32> to vector<16x128xf32>
    %297 = arith.mulf %282, %287 : vector<6x16x128xf32>
    %cst_161 = arith.constant dense<0.000000e+00> : vector<16x128xf32>
    %298 = vector.multi_reduction <add>, %297, %cst_161 [0] : vector<6x16x128xf32> to vector<16x128xf32>
    %299 = arith.addf %296, %298 : vector<16x128xf32>
    %c0_162 = arith.constant 0 : index
    %c1_163 = arith.constant 1 : index
    %c0_164 = arith.constant 0 : index
    %c0_165 = arith.constant 0 : index
    %300 = vector.load %arg3[%c0_162, %c1_163, %c0_164, %c0_165] : memref<1x3x16x128xf32, #tpu.memory_space<vmem>>, vector<1x1x16x128xf32>
    %301 = vector.shape_cast %300 : vector<1x1x16x128xf32> to vector<16x128xf32>
    %302 = vector.shape_cast %299 : vector<16x128xf32> to vector<1x1x16x128xf32>
    tpu.vector_store %arg3[%c0_162, %c1_163, %c0_164, %c0_165], %302 {strides = array<i32>} : memref<1x3x16x128xf32, #tpu.memory_space<vmem>>, vector<1x1x16x128xf32>,
    %c0_166 = arith.constant 0 : index
    %c2_167 = arith.constant 2 : index
    %c0_168 = arith.constant 0 : index
    %c0_169 = arith.constant 0 : index
    %303 = vector.load %arg3[%c0_166, %c2_167, %c0_168, %c0_169] : memref<1x3x16x128xf32, #tpu.memory_space<vmem>>, vector<1x1x16x128xf32>
    %304 = vector.shape_cast %303 : vector<1x1x16x128xf32> to vector<16x128xf32>
    %cst_170 = arith.constant dense<0.000000e+00> : vector<16x128xf32>
    %305 = vector.multi_reduction <add>, %287, %cst_170 [0] : vector<6x16x128xf32> to vector<16x128xf32>
    %306 = arith.addf %304, %305 : vector<16x128xf32>
    %c0_171 = arith.constant 0 : index
    %c2_172 = arith.constant 2 : index
    %c0_173 = arith.constant 0 : index
    %c0_174 = arith.constant 0 : index
    %307 = vector.load %arg3[%c0_171, %c2_172, %c0_173, %c0_174] : memref<1x3x16x128xf32, #tpu.memory_space<vmem>>, vector<1x1x16x128xf32>
    %308 = vector.shape_cast %307 : vector<1x1x16x128xf32> to vector<16x128xf32>
    %309 = vector.shape_cast %306 : vector<16x128xf32> to vector<1x1x16x128xf32>
    tpu.vector_store %arg3[%c0_171, %c2_172, %c0_173, %c0_174], %309 {strides = array<i32>} : memref<1x3x16x128xf32, #tpu.memory_space<vmem>>, vector<1x1x16x128xf32>,
    return
  }
  func.func @transform_0(%arg0: i32) -> (i32, i32, i32, i32) {
    %c0_i32 = arith.constant 0 : i32
    %c0_i32_0 = arith.constant 0 : i32
    %c0_i32_1 = arith.constant 0 : i32
    %c0_i32_2 = arith.constant 0 : i32
    return %arg0, %c0_i32, %c0_i32_0, %c0_i32_1 : i32, i32, i32, i32
  }
  func.func @transform_1(%arg0: i32) -> (i32, i32, i32, i32) {
    %c0_i32 = arith.constant 0 : i32
    %c0_i32_0 = arith.constant 0 : i32
    %c0_i32_1 = arith.constant 0 : i32
    %c0_i32_2 = arith.constant 0 : i32
    return %arg0, %c0_i32, %c0_i32_0, %c0_i32_1 : i32, i32, i32, i32
  }
  func.func @transform_2(%arg0: i32) -> (i32, i32, i32, i32) {
    %c0_i32 = arith.constant 0 : i32
    %c0_i32_0 = arith.constant 0 : i32
    %c0_i32_1 = arith.constant 0 : i32
    %c0_i32_2 = arith.constant 0 : i32
    return %arg0, %c0_i32, %c0_i32_0, %c0_i32_1 : i32, i32, i32, i32
  }
}

</mosaic_0001>

<llo_original>
// kernel: tpu_custom_call.1
$region0: #{tpu_custom_call.1}
  #allocation0 [shape = 'u32[]', space=smem, size = 0x4, offset = 0x4, fixed_abs, tag = 'smem constant byte address 0x4 - core index']
  #allocation1 [shape = 'u32[144,128]{1,0:T(1,128)}', space=vmem, size = 0x12000, scoped, tag = 'internal scratch']
  %s0 = inlined_call_operand.hbm [shape: f32[2,8,16,128], index: 0, kind: input, shape index: {}]
  %s1 = inlined_call_operand.hbm [shape: f32[2,8,16,128], index: 1, kind: input, shape index: {}]
  %s2 = inlined_call_operand.hbm [shape: f32[2,3,16,128], index: 2, kind: output, shape index: {}]
  %s3 = sld [smem:[#allocation0]]
  $region49: #{tpu_custom_call.1} parent=0
    _
  %s5 = ssub.s32 1, %s3
  %s6 = scalar_select 0, %s5, %s3
  $region1: #{tpu_custom_call.1} parent=0
    #allocation2 [shape = 'u8[131072]{0}', space=vmem, size = 0x20000, scoped, tag = 'input window, operand 0']
    #allocation3 [shape = 's32[2]{0}', space=sflag, size = 0x8, scoped, tag = 'scoped memory for tpu_custom_call.1']
    #allocation4 [shape = 's32[2]{0}', space=sflag, size = 0x8, scoped, tag = 'scoped memory for tpu_custom_call.1']
    #allocation5 [shape = 'u8[131072]{0}', space=vmem, size = 0x20000, scoped, tag = 'input window, operand 1']
    #allocation6 [shape = 's32[2]{0}', space=sflag, size = 0x8, scoped, tag = 'scoped memory for tpu_custom_call.1']
    #allocation7 [shape = 'u8[49152]{0}', space=vmem, size = 0xc000, scoped, tag = 'output window, operand 0']
    %7 = vsyncpa [#allocation3], 0
    %s8 = scalar_lea.sflag [#allocation3], 1
    %9 = vsyncpa %s8, 0
    %10 = vsyncpa [#allocation6], 0
    %s11 = scalar_lea.sflag [#allocation6], 1
    %12 = vsyncpa %s11, 0
    %13 = vsyncpa [#allocation4], 0
    %s14 = scalar_lea.sflag [#allocation4], 1
    %15 = vsyncpa %s14, 0
    loop: start=0, step=1, limit=4
    $region2: #{tpu_custom_call.1} parent=1 // loop_pre_header
      _
    $region3: #{tpu_custom_call.1} parent=1 // loop_header
      %s17 = sphi 0, %s21
      %p18 = scmp.ge.s32.totalorder %s17, 4
      %s27 = sphi 0, %s29
      %s30 = sphi 0, %s27
      %s31 = sphi 0, %s30
      %s47 = sphi 0, %s31
      %s53 = sphi 0, %s55
      %s56 = sphi 0, %s53
      %s57 = sphi 0, %s56
      %s73 = sphi 0, %s57
      %s79 = sphi 0, %s81
      %s82 = sphi 0, %s79
      %s83 = sphi 0, %s82
      %s99 = sphi 0, %s83
    $region4: #{tpu_custom_call.1} parent=1 // loop_header_branch
      %20 = sbr.rel (%p18) target = $region8
    $region5: #{tpu_custom_call.1} parent=1 // loop_body
      %s22 = ssub.s32 %s17, 1
      %s23 = ssub.s32 %s17, 2
      %s24 = sadd.s32 %s17, 1
      %s25 = ssub.s32 %s17, %s24
      %p26 = scmp.eq.s32.totalorder %s25, 0
      %s28 = sadd.s32 %s27, 1
      %s29 = scalar_select %p26, %s27, %s28
      %p32 = pneg %p26
      %p33 = scmp.eq.s32.totalorder %s17, 1
      %p34 = por %p32, %p33
      %p35 = scmp.ne.s32.totalorder %s27, %s30
      %p36 = scmp.eq.s32.totalorder %s17, 0
      %p37 = por %p35, %p36
      %p38 = scmp.ne.s32.totalorder %s27, %s30
      %p39 = scmp.eq.s32.totalorder %s22, 1
      %p40 = por %p38, %p39
      %p41 = scmp.ne.s32.totalorder %s30, %s31
      %p42 = scmp.eq.s32.totalorder %s22, 0
      %p43 = por %p41, %p42
      %p44 = scmp.ne.s32.totalorder %s30, %s31
      %p45 = scmp.eq.s32.totalorder %s23, 1
      %p46 = por %p44, %p45
      %p48 = scmp.ne.s32.totalorder %s31, %s47
      %p49 = scmp.eq.s32.totalorder %s23, 0
      %p50 = por %p48, %p49
      %s51 = ssub.s32 %s17, %s24
      %p52 = scmp.eq.s32.totalorder %s51, 0
      %s54 = sadd.s32 %s53, 1
      %s55 = scalar_select %p52, %s53, %s54
      %p58 = pneg %p52
      %p59 = scmp.eq.s32.totalorder %s17, 1
      %p60 = por %p58, %p59
      %p61 = scmp.ne.s32.totalorder %s53, %s56
      %p62 = scmp.eq.s32.totalorder %s17, 0
      %p63 = por %p61, %p62
      %p64 = scmp.ne.s32.totalorder %s53, %s56
      %p65 = scmp.eq.s32.totalorder %s22, 1
      %p66 = por %p64, %p65
      %p67 = scmp.ne.s32.totalorder %s56, %s57
      %p68 = scmp.eq.s32.totalorder %s22, 0
      %p69 = por %p67, %p68
      %p70 = scmp.ne.s32.totalorder %s56, %s57
      %p71 = scmp.eq.s32.totalorder %s23, 1
      %p72 = por %p70, %p71
      %p74 = scmp.ne.s32.totalorder %s57, %s73
      %p75 = scmp.eq.s32.totalorder %s23, 0
      %p76 = por %p74, %p75
      %s77 = ssub.s32 %s17, %s24
      %p78 = scmp.eq.s32.totalorder %s77, 0
      %s80 = sadd.s32 %s79, 1
      %s81 = scalar_select %p78, %s79, %s80
      %p84 = pneg %p78
      %p85 = scmp.eq.s32.totalorder %s17, 1
      %p86 = por %p84, %p85
      %p87 = scmp.ne.s32.totalorder %s79, %s82
      %p88 = scmp.eq.s32.totalorder %s17, 0
      %p89 = por %p87, %p88
      %p90 = scmp.ne.s32.totalorder %s79, %s82
      %p91 = scmp.eq.s32.totalorder %s22, 1
      %p92 = por %p90, %p91
      %p93 = scmp.ne.s32.totalorder %s82, %s83
      %p94 = scmp.eq.s32.totalorder %s22, 0
      %p95 = por %p93, %p94
      %p96 = scmp.ne.s32.totalorder %s82, %s83
      %p97 = scmp.eq.s32.totalorder %s23, 1
      %p98 = por %p96, %p97
      %p100 = scmp.ne.s32.totalorder %s83, %s99
      %p101 = scmp.eq.s32.totalorder %s23, 0
      %p102 = por %p100, %p101
      %p103 = scmp.le.s32.totalorder 1, %s17
      %p104 = scmp.lt.s32.totalorder %s17, 3
      %p105 = pnand %p103, %p104
      %p106 = pneg %p105
      // Predicated region
      $region9: #{tpu_custom_call.1} parent=5 // pred_check
        _
      $region10: #{tpu_custom_call.1} parent=5 // pred_check_branch
        %108 = sbr.rel (%p105) target = $region12
      $region11: #{tpu_custom_call.1} parent=5 // pred_region
        %s109 = ssub.s32 %s17, 1
      $region12: #{tpu_custom_call.1} parent=5 // pred_fallthru
        _
      %p110 = scmp.lt.s32.totalorder %s17, 2
      // Predicated region
      $region13: #{tpu_custom_call.1} parent=5 // pred_check
        %p111 = pneg %p110
      $region14: #{tpu_custom_call.1} parent=5 // pred_check_branch
        %113 = sbr.rel (%p111) target = $region16
      $region15: #{tpu_custom_call.1} parent=5 // pred_region
        // Predicated region
        $region17: #{tpu_custom_call.1} parent=15 // pred_check
          %p114 = pneg %p37
        $region18: #{tpu_custom_call.1} parent=15 // pred_check_branch
          %116 = sbr.rel (%p114) target = $region20
        $region19: #{tpu_custom_call.1} parent=15 // pred_region
          %s117 = sand.u32 %s27, 1
          %s118 = scalar_lea.sflag [#allocation3], %s117
          %s119 = sand.u32 %s27, 1
          %s120 = smul.addr %s119, 128
          %s121 = scalar_lea.vmem [#allocation2], %s120
          %s123 = ssub.s32 2048, 2048
          %124 = vsyncadd %s118, %s123
          %s125 = smul.addr %s17, 16
          %s126 = smul.addr %s125, 128
          %s127 = scalar_lea.hbm %s0, %s126
          %s128 = sshll.u32 %s121, 4
          %s129 = int_to_ptr.vmem [resolvable:$true] %s128
          %134 = dma.hbm_to_vmem [thread:$0]  %s127, 2048, %s129, %s118, 128, 128, 8
        $region20: #{tpu_custom_call.1} parent=15 // pred_fallthru
          _
        // Predicated region
        $region21: #{tpu_custom_call.1} parent=15 // pred_check
          %p135 = pneg %p63
        $region22: #{tpu_custom_call.1} parent=15 // pred_check_branch
          %137 = sbr.rel (%p135) target = $region24
        $region23: #{tpu_custom_call.1} parent=15 // pred_region
          %s138 = sand.u32 %s53, 1
          %s139 = scalar_lea.sflag [#allocation6], %s138
          %s140 = sand.u32 %s53, 1
          %s141 = smul.addr %s140, 128
          %s142 = scalar_lea.vmem [#allocation5], %s141
          %s144 = ssub.s32 2048, 2048
          %145 = vsyncadd %s139, %s144
          %s146 = smul.addr %s17, 16
          %s147 = smul.addr %s146, 128
          %s148 = scalar_lea.hbm %s1, %s147
          %s149 = sshll.u32 %s142, 4
          %s150 = int_to_ptr.vmem [resolvable:$true] %s149
          %155 = dma.hbm_to_vmem [thread:$0]  %s148, 2048, %s150, %s139, 128, 128, 8
        $region24: #{tpu_custom_call.1} parent=15 // pred_fallthru
          _
      $region16: #{tpu_custom_call.1} parent=5 // pred_fallthru
        _
      %p156 = scmp.le.s32.totalorder 1, %s17
      %p157 = scmp.lt.s32.totalorder %s17, 3
      %p158 = pnand %p156, %p157
      %p159 = pneg %p158
      // Predicated region
      $region25: #{tpu_custom_call.1} parent=5 // pred_check
        _
      $region26: #{tpu_custom_call.1} parent=5 // pred_check_branch
        %161 = sbr.rel (%p158) target = $region28
      $region27: #{tpu_custom_call.1} parent=5 // pred_region
        %s162 = ssub.s32 %s17, 1
        %s163 = sand.u32 %s30, 1
        %s164 = scalar_lea.sflag [#allocation3], %s163
        %s165 = sand.u32 %s30, 1
        %s166 = smul.addr %s165, 128
        %s167 = scalar_lea.vmem [#allocation2], %s166
        // Predicated region
        $region29: #{tpu_custom_call.1} parent=27 // pred_check
          %p168 = pneg %p43
        $region30: #{tpu_custom_call.1} parent=27 // pred_check_branch
          %170 = sbr.rel (%p168) target = $region32
        $region31: #{tpu_custom_call.1} parent=27 // pred_region
          %171 = dma.done %s164, 2048
        $region32: #{tpu_custom_call.1} parent=27 // pred_fallthru
          _
        %s172 = sand.u32 %s56, 1
        %s173 = scalar_lea.sflag [#allocation6], %s172
        %s174 = sand.u32 %s56, 1
        %s175 = smul.addr %s174, 128
        %s176 = scalar_lea.vmem [#allocation5], %s175
        // Predicated region
        $region33: #{tpu_custom_call.1} parent=27 // pred_check
          %p177 = pneg %p69
        $region34: #{tpu_custom_call.1} parent=27 // pred_check_branch
          %179 = sbr.rel (%p177) target = $region36
        $region35: #{tpu_custom_call.1} parent=27 // pred_region
          %180 = dma.done %s173, 2048
        $region36: #{tpu_custom_call.1} parent=27 // pred_fallthru
          _
        %s181 = sand.u32 %s30, 1
        %s182 = scalar_lea.sflag [#allocation3], %s181
        %s183 = sand.u32 %s30, 1
        %s184 = smul.addr %s183, 128
        %s185 = scalar_lea.vmem [#allocation2], %s184
        %p186 = pneg %p43
        %p187 = pneg %p40
        %s188 = sand.u32 %s56, 1
        %s189 = scalar_lea.sflag [#allocation6], %s188
        %s190 = sand.u32 %s56, 1
        %s191 = smul.addr %s190, 128
        %s192 = scalar_lea.vmem [#allocation5], %s191
        %p193 = pneg %p69
        %p194 = pneg %p66
        %p195 = pneg %p95
        %p196 = pneg %p92
        %s197 = sand.u32 %s82, 1
        %s198 = scalar_lea.sflag [#allocation4], %s197
        %s199 = sand.u32 %s82, 1
        %s200 = smul.addr %s199, 48
        %s201 = scalar_lea.vmem [#allocation7], %s200
        %v202 = vlaneseq
        %v203 = vand.u32 %v202, 127
        %vm204 = vcmp.lt.s32.totalorder %v203, 127
        %v205 = vsel %vm204, 1, 0
        %v206 = vcvt.s32.f32 %v205
        %vm207 = vcmp.gt.s32.totalorder %v203, 0
        %v208 = vsel %vm207, 1, 0
        %v209 = vcvt.s32.f32 %v208
        %v210 = vlaneseq
        %v211 = vshrl.u32 %v210, 7
        %v212 = vadd.s32 %v211, 8
        %vm213 = vcmp.lt.s32.totalorder %v211, 15
        %vm214 = vcmp.lt.s32.totalorder %v212, 15
        %v215 = vsel %vm213, 1, 0
        %v216 = vsel %vm214, 1, 0
        %v217 = vcvt.s32.f32 %v215
        %v218 = vcvt.s32.f32 %v216
        %vm219 = vcmp.gt.s32.totalorder %v211, 0
        %vm220 = vcmp.gt.s32.totalorder %v212, 0
        %v221 = vsel %vm219, 1, 0
        %v222 = vsel %vm220, 1, 0
        %v223 = vcvt.s32.f32 %v221
        %v224 = vcvt.s32.f32 %v222
        %225 = vst [vmem:[%s201] sm:$0xff] 0.0
        %226 = vst [vmem:[%s201 + $0x8] sm:$0xff] 0.0
        %227 = vst [vmem:[%s201 + $0x10] sm:$0xff] 0.0
        %228 = vst [vmem:[%s201 + $0x18] sm:$0xff] 0.0
        %229 = vst [vmem:[%s201 + $0x20] sm:$0xff] 0.0
        %230 = vst [vmem:[%s201 + $0x28] sm:$0xff] 0.0
        %v231 = vld [vmem:[%s167] sm:$0xff]
        %v232 = vld [vmem:[%s167 + $0x8] sm:$0xff]
        %v233 = vld [vmem:[%s176] sm:$0xff]
        %v234 = vld [vmem:[%s176 + $0x8] sm:$0xff]
        %s235 = scalar_lea.vmem %s167, 16 [#allocation2]
        %v236 = vld [vmem:[%s235] sm:$0xff]
        %v237 = vld [vmem:[%s235 + $0x8] sm:$0xff]
        %s238 = scalar_lea.vmem %s176, 16 [#allocation5]
        %v239 = vld [vmem:[%s238] sm:$0xff]
        %v240 = vld [vmem:[%s238 + $0x8] sm:$0xff]
        %241 = vrot.lane.b32.xlu0 %v231, 127
        %v242 = vpop.permute.xlu0 %241
        %243 = vrot.lane.b32.xlu0 %v232, 127
        %v244 = vpop.permute.xlu0 %243
        %v245 = vmul.f32 %v242, %v206
        %v246 = vmul.f32 %v244, %v206
        %247 = vrot.lane.b32.xlu0 %v231, 1
        %v248 = vpop.permute.xlu0 %247
        %249 = vrot.lane.b32.xlu0 %v232, 1
        %v250 = vpop.permute.xlu0 %249
        %v251 = vmul.f32 %v248, %v209
        %v252 = vmul.f32 %v250, %v209
        %v253 = vsub.f32 %v245, %v251
        %v254 = vsub.f32 %v246, %v252
        %v255 = vrot.slane %v231, 1
        %v256 = vrot.slane %v232, 1
        %vm257 = vcmp.lt.s32.totalorder %v211, 7
        %v258 = vsel %vm257, %v255, %v256
        %v259 = vsel %vm257, %v256, %v255
        %v260 = vmul.f32 %v258, %v217
        %v261 = vmul.f32 %v259, %v218
        %v262 = vrot.slane %v231, 7
        %v263 = vrot.slane %v232, 7
        %vm264 = vcmp.lt.s32.totalorder %v211, 1
        %v265 = vsel %vm264, %v262, %v263
        %v266 = vsel %vm264, %v263, %v262
        %v267 = vmul.f32 %v266, %v223
        %v268 = vmul.f32 %v265, %v224
        %v269 = vsub.f32 %v260, %v267
        %v270 = vsub.f32 %v261, %v268
        %271 = vrot.lane.b32.xlu0 %v233, 127
        %v272 = vpop.permute.xlu0 %271
        %273 = vrot.lane.b32.xlu0 %v234, 127
        %v274 = vpop.permute.xlu0 %273
        %v275 = vmul.f32 %v272, %v206
        %v276 = vmul.f32 %v274, %v206
        %277 = vrot.lane.b32.xlu0 %v233, 1
        %v278 = vpop.permute.xlu0 %277
        %279 = vrot.lane.b32.xlu0 %v234, 1
        %v280 = vpop.permute.xlu0 %279
        %v281 = vmul.f32 %v278, %v209
        %v282 = vmul.f32 %v280, %v209
        %v283 = vsub.f32 %v275, %v281
        %v284 = vsub.f32 %v276, %v282
        %v285 = vrot.slane %v233, 1
        %v286 = vrot.slane %v234, 1
        %v287 = vsel %vm257, %v285, %v286
        %v288 = vsel %vm257, %v286, %v285
        %v289 = vmul.f32 %v287, %v217
        %v290 = vmul.f32 %v288, %v218
        %v291 = vrot.slane %v233, 7
        %v292 = vrot.slane %v234, 7
        %v293 = vsel %vm264, %v291, %v292
        %v294 = vsel %vm264, %v292, %v291
        %v295 = vmul.f32 %v294, %v223
        %v296 = vmul.f32 %v293, %v224
        %v297 = vsub.f32 %v289, %v295
        %v298 = vsub.f32 %v290, %v296
        %v299 = vmul.f32 %v253, %v253
        %v300 = vmul.f32 %v254, %v254
        %v301 = vmul.f32 %v236, %v236
        %v302 = vmul.f32 %v237, %v237
        %v303 = vadd.f32 %v299, %v301
        %v304 = vadd.f32 %v300, %v302
        %v305 = vmul.f32 %v269, %v269
        %v306 = vmul.f32 %v270, %v270
        %v307 = vadd.f32 %v303, %v305
        %v308 = vadd.f32 %v304, %v306
        %v309 = vmul.f32 %v283, %v283
        %v310 = vmul.f32 %v284, %v284
        %v311 = vmul.f32 %v239, %v239
        %v312 = vmul.f32 %v240, %v240
        %v313 = vadd.f32 %v309, %v311
        %v314 = vadd.f32 %v310, %v312
        %v315 = vmul.f32 %v297, %v297
        %v316 = vmul.f32 %v298, %v298
        %v317 = vadd.f32 %v313, %v315
        %v318 = vadd.f32 %v314, %v316
        %v319 = vmul.f32 %v253, %v283
        %v320 = vmul.f32 %v254, %v284
        %v321 = vmul.f32 %v236, %v239
        %v322 = vmul.f32 %v237, %v240
        %v323 = vadd.f32 %v319, %v321
        %v324 = vadd.f32 %v320, %v322
        %v325 = vmul.f32 %v269, %v297
        %v326 = vmul.f32 %v270, %v298
        %v327 = vadd.f32 %v323, %v325
        %v328 = vadd.f32 %v324, %v326
        %v329 = vadd.f32 %v307, 4e-16
        %v330 = vadd.f32 %v308, 4e-16
        %v331 = vrsqrt.pop %v329
        %v332 = vrsqrt.pop %v330
        %v333 = vadd.f32 %v317, 4e-16
        %v334 = vadd.f32 %v318, 4e-16
        %v335 = vrsqrt.pop %v333
        %v336 = vrsqrt.pop %v334
        %v337 = vmul.f32 %v307, %v331
        %v338 = vmul.f32 %v308, %v332
        %v339 = vmul.f32 %v337, 0.5
        %v340 = vmul.f32 %v338, 0.5
        %v341 = vsub.f32 %v339, 1.0
        %v342 = vsub.f32 %v340, 1.0
        %v343 = vmul.f32 %v341, %v341
        %v344 = vmul.f32 %v342, %v342
        %v345 = vmul.f32 %v331, %v335
        %v346 = vmul.f32 %v332, %v336
        %v347 = vmul.f32 %v327, %v345
        %v348 = vmul.f32 %v328, %v346
        %v349 = vand.u32 2147483647, %v233
        %v350 = vand.u32 2147483647, %v234
        %vm351 = vcmp.lt.f32.partialorder %v349, 2.0
        %vm352 = vcmp.lt.f32.partialorder %v350, 2.0
        %v353 = vsel %vm351, 1, 0
        %v354 = vsel %vm352, 1, 0
        %v355 = vcvt.s32.f32 %v353
        %v356 = vcvt.s32.f32 %v354
        %v357 = vld [vmem:[%s201] sm:$0xff]
        %v358 = vld [vmem:[%s201 + $0x8] sm:$0xff]
        %v359 = vadd.f32 %v343, 0.0
        %v360 = vadd.f32 %v344, 0.0
        %v361 = vadd.f32 %v357, %v359
        %v362 = vadd.f32 %v358, %v360
        %363 = vst [vmem:[%s201] sm:$0xff] %v361
        %364 = vst [vmem:[%s201 + $0x8] sm:$0xff] %v362
        %s365 = scalar_lea.vmem %s201, 16 [#allocation7]
        %v366 = vld [vmem:[%s365] sm:$0xff]
        %v367 = vld [vmem:[%s365 + $0x8] sm:$0xff]
        %v368 = vmul.f32 %v347, %v355
        %v369 = vmul.f32 %v348, %v356
        %v370 = vadd.f32 %v368, 0.0
        %v371 = vadd.f32 %v369, 0.0
        %v372 = vadd.f32 %v366, %v370
        %v373 = vadd.f32 %v367, %v371
        %374 = vst [vmem:[%s365] sm:$0xff] %v372
        %375 = vst [vmem:[%s365 + $0x8] sm:$0xff] %v373
        %s376 = scalar_lea.vmem %s201, 32 [#allocation7]
        %v377 = vld [vmem:[%s376] sm:$0xff]
        %v378 = vld [vmem:[%s376 + $0x8] sm:$0xff]
        %v379 = vadd.f32 %v355, 0.0
        %v380 = vadd.f32 %v356, 0.0
        %v381 = vadd.f32 %v377, %v379
        %v382 = vadd.f32 %v378, %v380
        %383 = vst [vmem:[%s376] sm:$0xff] %v381
        %384 = vst [vmem:[%s376 + $0x8] sm:$0xff] %v382
        %s385 = scalar_lea.vmem %s167, 112 [#allocation2]
        %v386 = vld [vmem:[%s385] sm:$0xff]
        %v387 = vld [vmem:[%s385 + $0x8] sm:$0xff]
        %s388 = scalar_lea.vmem %s176, 112 [#allocation5]
        %v389 = vld [vmem:[%s388] sm:$0xff]
        %v390 = vld [vmem:[%s388 + $0x8] sm:$0xff]
        %s391 = scalar_lea.vmem %s167, 96 [#allocation2]
        %v392 = vld [vmem:[%s391] sm:$0xff]
        %v393 = vld [vmem:[%s391 + $0x8] sm:$0xff]
        %s394 = scalar_lea.vmem %s176, 96 [#allocation5]
        %v395 = vld [vmem:[%s394] sm:$0xff]
        %v396 = vld [vmem:[%s394 + $0x8] sm:$0xff]
        %397 = vrot.lane.b32.xlu0 %v386, 127
        %v398 = vpop.permute.xlu0 %397
        %399 = vrot.lane.b32.xlu0 %v387, 127
        %v400 = vpop.permute.xlu0 %399
        %v401 = vmul.f32 %v398, %v206
        %v402 = vmul.f32 %v400, %v206
        %403 = vrot.lane.b32.xlu0 %v386, 1
        %v404 = vpop.permute.xlu0 %403
        %405 = vrot.lane.b32.xlu0 %v387, 1
        %v406 = vpop.permute.xlu0 %405
        %v407 = vmul.f32 %v404, %v209
        %v408 = vmul.f32 %v406, %v209
        %v409 = vsub.f32 %v401, %v407
        %v410 = vsub.f32 %v402, %v408
        %v411 = vrot.slane %v386, 1
        %v412 = vrot.slane %v387, 1
        %v413 = vsel %vm257, %v411, %v412
        %v414 = vsel %vm257, %v412, %v411
        %v415 = vmul.f32 %v413, %v217
        %v416 = vmul.f32 %v414, %v218
        %v417 = vrot.slane %v386, 7
        %v418 = vrot.slane %v387, 7
        %v419 = vsel %vm264, %v417, %v418
        %v420 = vsel %vm264, %v418, %v417
        %v421 = vmul.f32 %v420, %v223
        %v422 = vmul.f32 %v419, %v224
        %v423 = vsub.f32 %v415, %v421
        %v424 = vsub.f32 %v416, %v422
        %425 = vrot.lane.b32.xlu0 %v389, 127
        %v426 = vpop.permute.xlu0 %425
        %427 = vrot.lane.b32.xlu0 %v390, 127
        %v428 = vpop.permute.xlu0 %427
        %v429 = vmul.f32 %v426, %v206
        %v430 = vmul.f32 %v428, %v206
        %431 = vrot.lane.b32.xlu0 %v389, 1
        %v432 = vpop.permute.xlu0 %431
        %433 = vrot.lane.b32.xlu0 %v390, 1
        %v434 = vpop.permute.xlu0 %433
        %v435 = vmul.f32 %v432, %v209
        %v436 = vmul.f32 %v434, %v209
        %v437 = vsub.f32 %v429, %v435
        %v438 = vsub.f32 %v430, %v436
        %v439 = vrot.slane %v389, 1
        %v440 = vrot.slane %v390, 1
        %v441 = vsel %vm257, %v439, %v440
        %v442 = vsel %vm257, %v440, %v439
        %v443 = vmul.f32 %v441, %v217
        %v444 = vmul.f32 %v442, %v218
        %v445 = vrot.slane %v389, 7
        %v446 = vrot.slane %v390, 7
        %v447 = vsel %vm264, %v445, %v446
        %v448 = vsel %vm264, %v446, %v445
        %v449 = vmul.f32 %v448, %v223
        %v450 = vmul.f32 %v447, %v224
        %v451 = vsub.f32 %v443, %v449
        %v452 = vsub.f32 %v444, %v450
        %v453 = vmul.f32 %v409, %v409
        %v454 = vmul.f32 %v410, %v410
        %v455 = vmul.f32 %v392, %v392
        %v456 = vmul.f32 %v393, %v393
        %v457 = vadd.f32 %v453, %v455
        %v458 = vadd.f32 %v454, %v456
        %v459 = vmul.f32 %v423, %v423
        %v460 = vmul.f32 %v424, %v424
        %v461 = vadd.f32 %v457, %v459
        %v462 = vadd.f32 %v458, %v460
        %v463 = vmul.f32 %v437, %v437
        %v464 = vmul.f32 %v438, %v438
        %v465 = vmul.f32 %v395, %v395
        %v466 = vmul.f32 %v396, %v396
        %v467 = vadd.f32 %v463, %v465
        %v468 = vadd.f32 %v464, %v466
        %v469 = vmul.f32 %v451, %v451
        %v470 = vmul.f32 %v452, %v452
        %v471 = vadd.f32 %v467, %v469
        %v472 = vadd.f32 %v468, %v470
        %v473 = vmul.f32 %v409, %v437
        %v474 = vmul.f32 %v410, %v438
        %v475 = vmul.f32 %v392, %v395
        %v476 = vmul.f32 %v393, %v396
        %v477 = vadd.f32 %v473, %v475
        %v478 = vadd.f32 %v474, %v476
        %v479 = vmul.f32 %v423, %v451
        %v480 = vmul.f32 %v424, %v452
        %v481 = vadd.f32 %v477, %v479
        %v482 = vadd.f32 %v478, %v480
        %v483 = vadd.f32 %v461, 4e-16
        %v484 = vadd.f32 %v462, 4e-16
        %v485 = vrsqrt.pop %v483
        %v486 = vrsqrt.pop %v484
        %v487 = vadd.f32 %v471, 4e-16
        %v488 = vadd.f32 %v472, 4e-16
        %v489 = vrsqrt.pop %v487
        %v490 = vrsqrt.pop %v488
        %v491 = vmul.f32 %v461, %v485
        %v492 = vmul.f32 %v462, %v486
        %v493 = vmul.f32 %v491, 0.5
        %v494 = vmul.f32 %v492, 0.5
        %v495 = vsub.f32 %v493, 1.0
        %v496 = vsub.f32 %v494, 1.0
        %v497 = vmul.f32 %v495, %v495
        %v498 = vmul.f32 %v496, %v496
        %v499 = vmul.f32 %v485, %v489
        %v500 = vmul.f32 %v486, %v490
        %v501 = vmul.f32 %v481, %v499
        %v502 = vmul.f32 %v482, %v500
        %v503 = vand.u32 2147483647, %v389
        %v504 = vand.u32 2147483647, %v390
        %vm505 = vcmp.lt.f32.partialorder %v503, 2.0
        %vm506 = vcmp.lt.f32.partialorder %v504, 2.0
        %v507 = vsel %vm505, 1, 0
        %v508 = vsel %vm506, 1, 0
        %v509 = vcvt.s32.f32 %v507
        %v510 = vcvt.s32.f32 %v508
        %v511 = vld [vmem:[%s201] sm:$0xff]
        %v512 = vld [vmem:[%s201 + $0x8] sm:$0xff]
        %v513 = vadd.f32 %v497, 0.0
        %v514 = vadd.f32 %v498, 0.0
        %v515 = vadd.f32 %v511, %v513
        %v516 = vadd.f32 %v512, %v514
        %517 = vst [vmem:[%s201] sm:$0xff] %v515
        %518 = vst [vmem:[%s201 + $0x8] sm:$0xff] %v516
        %v519 = vld [vmem:[%s365] sm:$0xff]
        %v520 = vld [vmem:[%s365 + $0x8] sm:$0xff]
        %v521 = vmul.f32 %v501, %v509
        %v522 = vmul.f32 %v502, %v510
        %v523 = vadd.f32 %v521, 0.0
        %v524 = vadd.f32 %v522, 0.0
        %v525 = vadd.f32 %v519, %v523
        %v526 = vadd.f32 %v520, %v524
        %527 = vst [vmem:[%s365] sm:$0xff] %v525
        %528 = vst [vmem:[%s365 + $0x8] sm:$0xff] %v526
        %v529 = vld [vmem:[%s376] sm:$0xff]
        %v530 = vld [vmem:[%s376 + $0x8] sm:$0xff]
        %v531 = vadd.f32 %v509, 0.0
        %v532 = vadd.f32 %v510, 0.0
        %v533 = vadd.f32 %v529, %v531
        %v534 = vadd.f32 %v530, %v532
        %535 = vst [vmem:[%s376] sm:$0xff] %v533
        %536 = vst [vmem:[%s376 + $0x8] sm:$0xff] %v534
        %s537 = scalar_lea.vmem %s167, 32 [#allocation2]
        %v538 = vld [vmem:[%s537] sm:$0xff]
        %v539 = vld [vmem:[%s537 + $0x8] sm:$0xff]
        %v540 = vld [vmem:[%s537 + $0x10] sm:$0xff]
        %v541 = vld [vmem:[%s537 + $0x18] sm:$0xff]
        %v542 = vld [vmem:[%s537 + $0x20] sm:$0xff]
        %v543 = vld [vmem:[%s537 + $0x28] sm:$0xff]
        %v544 = vld [vmem:[%s537 + $0x30] sm:$0xff]
        %v545 = vld [vmem:[%s537 + $0x38] sm:$0xff]
        %v546 = vld [vmem:[%s537 + $0x40] sm:$0xff]
        %v547 = vld [vmem:[%s537 + $0x48] sm:$0xff]
        %v548 = vld [vmem:[%s537 + $0x50] sm:$0xff]
        %v549 = vld [vmem:[%s537 + $0x58] sm:$0xff]
        %v550 = vld [vmem:[%s167] sm:$0xff]
        %v551 = vld [vmem:[%s167 + $0x8] sm:$0xff]
        %v552 = vld [vmem:[%s167 + $0x10] sm:$0xff]
        %v553 = vld [vmem:[%s167 + $0x18] sm:$0xff]
        %v554 = vld [vmem:[%s167 + $0x20] sm:$0xff]
        %v555 = vld [vmem:[%s167 + $0x28] sm:$0xff]
        %v556 = vld [vmem:[%s167 + $0x30] sm:$0xff]
        %v557 = vld [vmem:[%s167 + $0x38] sm:$0xff]
        %v558 = vld [vmem:[%s167 + $0x40] sm:$0xff]
        %v559 = vld [vmem:[%s167 + $0x48] sm:$0xff]
        %v560 = vld [vmem:[%s167 + $0x50] sm:$0xff]
        %v561 = vld [vmem:[%s167 + $0x58] sm:$0xff]
        %v562 = vsub.f32 %v538, %v550
        %v563 = vsub.f32 %v539, %v551
        %v564 = vsub.f32 %v540, %v552
        %v565 = vsub.f32 %v541, %v553
        %v566 = vsub.f32 %v542, %v554
        %v567 = vsub.f32 %v543, %v555
        %v568 = vsub.f32 %v544, %v556
        %v569 = vsub.f32 %v545, %v557
        %v570 = vsub.f32 %v546, %v558
        %v571 = vsub.f32 %v547, %v559
        %v572 = vsub.f32 %v548, %v560
        %v573 = vsub.f32 %v549, %v561
        %s574 = scalar_lea.vmem %s176, 32 [#allocation5]
        %v575 = vld [vmem:[%s574] sm:$0xff]
        %v576 = vld [vmem:[%s574 + $0x8] sm:$0xff]
        %v577 = vld [vmem:[%s574 + $0x10] sm:$0xff]
        %v578 = vld [vmem:[%s574 + $0x18] sm:$0xff]
        %v579 = vld [vmem:[%s574 + $0x20] sm:$0xff]
        %v580 = vld [vmem:[%s574 + $0x28] sm:$0xff]
        %v581 = vld [vmem:[%s574 + $0x30] sm:$0xff]
        %v582 = vld [vmem:[%s574 + $0x38] sm:$0xff]
        %v583 = vld [vmem:[%s574 + $0x40] sm:$0xff]
        %v584 = vld [vmem:[%s574 + $0x48] sm:$0xff]
        %v585 = vld [vmem:[%s574 + $0x50] sm:$0xff]
        %v586 = vld [vmem:[%s574 + $0x58] sm:$0xff]
        %v587 = vld [vmem:[%s176] sm:$0xff]
        %v588 = vld [vmem:[%s176 + $0x8] sm:$0xff]
        %v589 = vld [vmem:[%s176 + $0x10] sm:$0xff]
        %v590 = vld [vmem:[%s176 + $0x18] sm:$0xff]
        %v591 = vld [vmem:[%s176 + $0x20] sm:$0xff]
        %v592 = vld [vmem:[%s176 + $0x28] sm:$0xff]
        %v593 = vld [vmem:[%s176 + $0x30] sm:$0xff]
        %v594 = vld [vmem:[%s176 + $0x38] sm:$0xff]
        %v595 = vld [vmem:[%s176 + $0x40] sm:$0xff]
        %v596 = vld [vmem:[%s176 + $0x48] sm:$0xff]
        %v597 = vld [vmem:[%s176 + $0x50] sm:$0xff]
        %v598 = vld [vmem:[%s176 + $0x58] sm:$0xff]
        %v599 = vsub.f32 %v575, %v587
        %v600 = vsub.f32 %v576, %v588
        %v601 = vsub.f32 %v577, %v589
        %v602 = vsub.f32 %v578, %v590
        %v603 = vsub.f32 %v579, %v591
        %v604 = vsub.f32 %v580, %v592
        %v605 = vsub.f32 %v581, %v593
        %v606 = vsub.f32 %v582, %v594
        %v607 = vsub.f32 %v583, %v595
        %v608 = vsub.f32 %v584, %v596
        %v609 = vsub.f32 %v585, %v597
        %v610 = vsub.f32 %v586, %v598
        %v611 = vld [vmem:[%s235] sm:$0xff]
        %v612 = vld [vmem:[%s235 + $0x8] sm:$0xff]
        %v613 = vld [vmem:[%s235 + $0x10] sm:$0xff]
        %v614 = vld [vmem:[%s235 + $0x18] sm:$0xff]
        %v615 = vld [vmem:[%s235 + $0x20] sm:$0xff]
        %v616 = vld [vmem:[%s235 + $0x28] sm:$0xff]
        %v617 = vld [vmem:[%s235 + $0x30] sm:$0xff]
        %v618 = vld [vmem:[%s235 + $0x38] sm:$0xff]
        %v619 = vld [vmem:[%s235 + $0x40] sm:$0xff]
        %v620 = vld [vmem:[%s235 + $0x48] sm:$0xff]
        %v621 = vld [vmem:[%s235 + $0x50] sm:$0xff]
        %v622 = vld [vmem:[%s235 + $0x58] sm:$0xff]
        %v623 = vld [vmem:[%s238] sm:$0xff]
        %v624 = vld [vmem:[%s238 + $0x8] sm:$0xff]
        %v625 = vld [vmem:[%s238 + $0x10] sm:$0xff]
        %v626 = vld [vmem:[%s238 + $0x18] sm:$0xff]
        %v627 = vld [vmem:[%s238 + $0x20] sm:$0xff]
        %v628 = vld [vmem:[%s238 + $0x28] sm:$0xff]
        %v629 = vld [vmem:[%s238 + $0x30] sm:$0xff]
        %v630 = vld [vmem:[%s238 + $0x38] sm:$0xff]
        %v631 = vld [vmem:[%s238 + $0x40] sm:$0xff]
        %v632 = vld [vmem:[%s238 + $0x48] sm:$0xff]
        %v633 = vld [vmem:[%s238 + $0x50] sm:$0xff]
        %v634 = vld [vmem:[%s238 + $0x58] sm:$0xff]
        %635 = vrot.lane.b32.xlu0 %v611, 127
        %v636 = vpop.permute.xlu0 %635
        %637 = vrot.lane.b32.xlu0 %v612, 127
        %v638 = vpop.permute.xlu0 %637
        %639 = vrot.lane.b32.xlu0 %v613, 127
        %v640 = vpop.permute.xlu0 %639
        %641 = vrot.lane.b32.xlu0 %v614, 127
        %v642 = vpop.permute.xlu0 %641
        %643 = vrot.lane.b32.xlu0 %v615, 127
        %v644 = vpop.permute.xlu0 %643
        %645 = vrot.lane.b32.xlu0 %v616, 127
        %v646 = vpop.permute.xlu0 %645
        %647 = vrot.lane.b32.xlu0 %v617, 127
        %v648 = vpop.permute.xlu0 %647
        %649 = vrot.lane.b32.xlu0 %v618, 127
        %v650 = vpop.permute.xlu0 %649
        %651 = vrot.lane.b32.xlu0 %v619, 127
        %v652 = vpop.permute.xlu0 %651
        %653 = vrot.lane.b32.xlu0 %v620, 127
        %v654 = vpop.permute.xlu0 %653
        %655 = vrot.lane.b32.xlu0 %v621, 127
        %v656 = vpop.permute.xlu0 %655
        %657 = vrot.lane.b32.xlu0 %v622, 127
        %v658 = vpop.permute.xlu0 %657
        %v659 = vmul.f32 %v636, %v206
        %v660 = vmul.f32 %v638, %v206
        %v661 = vmul.f32 %v640, %v206
        %v662 = vmul.f32 %v642, %v206
        %v663 = vmul.f32 %v644, %v206
        %v664 = vmul.f32 %v646, %v206
        %v665 = vmul.f32 %v648, %v206
        %v666 = vmul.f32 %v650, %v206
        %v667 = vmul.f32 %v652, %v206
        %v668 = vmul.f32 %v654, %v206
        %v669 = vmul.f32 %v656, %v206
        %v670 = vmul.f32 %v658, %v206
        %671 = vrot.lane.b32.xlu0 %v611, 1
        %v672 = vpop.permute.xlu0 %671
        %673 = vrot.lane.b32.xlu0 %v612, 1
        %v674 = vpop.permute.xlu0 %673
        %675 = vrot.lane.b32.xlu0 %v613, 1
        %v676 = vpop.permute.xlu0 %675
        %677 = vrot.lane.b32.xlu0 %v614, 1
        %v678 = vpop.permute.xlu0 %677
        %679 = vrot.lane.b32.xlu0 %v615, 1
        %v680 = vpop.permute.xlu0 %679
        %681 = vrot.lane.b32.xlu0 %v616, 1
        %v682 = vpop.permute.xlu0 %681
        %683 = vrot.lane.b32.xlu0 %v617, 1
        %v684 = vpop.permute.xlu0 %683
        %685 = vrot.lane.b32.xlu0 %v618, 1
        %v686 = vpop.permute.xlu0 %685
        %687 = vrot.lane.b32.xlu0 %v619, 1
        %v688 = vpop.permute.xlu0 %687
        %689 = vrot.lane.b32.xlu0 %v620, 1
        %v690 = vpop.permute.xlu0 %689
        %691 = vrot.lane.b32.xlu0 %v621, 1
        %v692 = vpop.permute.xlu0 %691
        %693 = vrot.lane.b32.xlu0 %v622, 1
        %v694 = vpop.permute.xlu0 %693
        %v695 = vmul.f32 %v672, %v209
        %v696 = vmul.f32 %v674, %v209
        %v697 = vmul.f32 %v676, %v209
        %v698 = vmul.f32 %v678, %v209
        %v699 = vmul.f32 %v680, %v209
        %v700 = vmul.f32 %v682, %v209
        %v701 = vmul.f32 %v684, %v209
        %v702 = vmul.f32 %v686, %v209
        %v703 = vmul.f32 %v688, %v209
        %v704 = vmul.f32 %v690, %v209
        %v705 = vmul.f32 %v692, %v209
        %v706 = vmul.f32 %v694, %v209
        %v707 = vsub.f32 %v659, %v695
        %v708 = vsub.f32 %v660, %v696
        %v709 = vsub.f32 %v661, %v697
        %v710 = vsub.f32 %v662, %v698
        %v711 = vsub.f32 %v663, %v699
        %v712 = vsub.f32 %v664, %v700
        %v713 = vsub.f32 %v665, %v701
        %v714 = vsub.f32 %v666, %v702
        %v715 = vsub.f32 %v667, %v703
        %v716 = vsub.f32 %v668, %v704
        %v717 = vsub.f32 %v669, %v705
        %v718 = vsub.f32 %v670, %v706
        %v719 = vrot.slane %v611, 1
        %v720 = vrot.slane %v613, 1
        %v721 = vrot.slane %v615, 1
        %v722 = vrot.slane %v617, 1
        %v723 = vrot.slane %v619, 1
        %v724 = vrot.slane %v621, 1
        %v725 = vrot.slane %v612, 1
        %v726 = vrot.slane %v614, 1
        %v727 = vrot.slane %v616, 1
        %v728 = vrot.slane %v618, 1
        %v729 = vrot.slane %v620, 1
        %v730 = vrot.slane %v622, 1
        %v731 = vsel %vm257, %v719, %v725
        %v732 = vsel %vm257, %v720, %v726
        %v733 = vsel %vm257, %v721, %v727
        %v734 = vsel %vm257, %v722, %v728
        %v735 = vsel %vm257, %v723, %v729
        %v736 = vsel %vm257, %v724, %v730
        %v737 = vsel %vm257, %v725, %v719
        %v738 = vsel %vm257, %v726, %v720
        %v739 = vsel %vm257, %v727, %v721
        %v740 = vsel %vm257, %v728, %v722
        %v741 = vsel %vm257, %v729, %v723
        %v742 = vsel %vm257, %v730, %v724
        %v743 = vmul.f32 %v731, %v217
        %v744 = vmul.f32 %v737, %v218
        %v745 = vmul.f32 %v732, %v217
        %v746 = vmul.f32 %v738, %v218
        %v747 = vmul.f32 %v733, %v217
        %v748 = vmul.f32 %v739, %v218
        %v749 = vmul.f32 %v734, %v217
        %v750 = vmul.f32 %v740, %v218
        %v751 = vmul.f32 %v735, %v217
        %v752 = vmul.f32 %v741, %v218
        %v753 = vmul.f32 %v736, %v217
        %v754 = vmul.f32 %v742, %v218
        %v755 = vrot.slane %v611, 7
        %v756 = vrot.slane %v613, 7
        %v757 = vrot.slane %v615, 7
        %v758 = vrot.slane %v617, 7
        %v759 = vrot.slane %v619, 7
        %v760 = vrot.slane %v621, 7
        %v761 = vrot.slane %v612, 7
        %v762 = vrot.slane %v614, 7
        %v763 = vrot.slane %v616, 7
        %v764 = vrot.slane %v618, 7
        %v765 = vrot.slane %v620, 7
        %v766 = vrot.slane %v622, 7
        %v767 = vsel %vm264, %v755, %v761
        %v768 = vsel %vm264, %v756, %v762
        %v769 = vsel %vm264, %v757, %v763
        %v770 = vsel %vm264, %v758, %v764
        %v771 = vsel %vm264, %v759, %v765
        %v772 = vsel %vm264, %v760, %v766
        %v773 = vsel %vm264, %v761, %v755
        %v774 = vsel %vm264, %v762, %v756
        %v775 = vsel %vm264, %v763, %v757
        %v776 = vsel %vm264, %v764, %v758
        %v777 = vsel %vm264, %v765, %v759
        %v778 = vsel %vm264, %v766, %v760
        %v779 = vmul.f32 %v773, %v223
        %v780 = vmul.f32 %v767, %v224
        %v781 = vmul.f32 %v774, %v223
        %v782 = vmul.f32 %v768, %v224
        %v783 = vmul.f32 %v775, %v223
        %v784 = vmul.f32 %v769, %v224
        %v785 = vmul.f32 %v776, %v223
        %v786 = vmul.f32 %v770, %v224
        %v787 = vmul.f32 %v777, %v223
        %v788 = vmul.f32 %v771, %v224
        %v789 = vmul.f32 %v778, %v223
        %v790 = vmul.f32 %v772, %v224
        %v791 = vsub.f32 %v743, %v779
        %v792 = vsub.f32 %v744, %v780
        %v793 = vsub.f32 %v745, %v781
        %v794 = vsub.f32 %v746, %v782
        %v795 = vsub.f32 %v747, %v783
        %v796 = vsub.f32 %v748, %v784
        %v797 = vsub.f32 %v749, %v785
        %v798 = vsub.f32 %v750, %v786
        %v799 = vsub.f32 %v751, %v787
        %v800 = vsub.f32 %v752, %v788
        %v801 = vsub.f32 %v753, %v789
        %v802 = vsub.f32 %v754, %v790
        %803 = vrot.lane.b32.xlu0 %v623, 127
        %v804 = vpop.permute.xlu0 %803
        %805 = vrot.lane.b32.xlu0 %v624, 127
        %v806 = vpop.permute.xlu0 %805
        %807 = vrot.lane.b32.xlu0 %v625, 127
        %v808 = vpop.permute.xlu0 %807
        %809 = vrot.lane.b32.xlu0 %v626, 127
        %v810 = vpop.permute.xlu0 %809
        %811 = vrot.lane.b32.xlu0 %v627, 127
        %v812 = vpop.permute.xlu0 %811
        %813 = vrot.lane.b32.xlu0 %v628, 127
        %v814 = vpop.permute.xlu0 %813
        %815 = vrot.lane.b32.xlu0 %v629, 127
        %v816 = vpop.permute.xlu0 %815
        %817 = vrot.lane.b32.xlu0 %v630, 127
        %v818 = vpop.permute.xlu0 %817
        %819 = vrot.lane.b32.xlu0 %v631, 127
        %v820 = vpop.permute.xlu0 %819
        %821 = vrot.lane.b32.xlu0 %v632, 127
        %v822 = vpop.permute.xlu0 %821
        %823 = vrot.lane.b32.xlu0 %v633, 127
        %v824 = vpop.permute.xlu0 %823
        %825 = vrot.lane.b32.xlu0 %v634, 127
        %v826 = vpop.permute.xlu0 %825
        %v827 = vmul.f32 %v804, %v206
        %v828 = vmul.f32 %v806, %v206
        %v829 = vmul.f32 %v808, %v206
        %v830 = vmul.f32 %v810, %v206
        %v831 = vmul.f32 %v812, %v206
        %v832 = vmul.f32 %v814, %v206
        %v833 = vmul.f32 %v816, %v206
        %v834 = vmul.f32 %v818, %v206
        %v835 = vmul.f32 %v820, %v206
        %v836 = vmul.f32 %v822, %v206
        %v837 = vmul.f32 %v824, %v206
        %v838 = vmul.f32 %v826, %v206
        %839 = vrot.lane.b32.xlu0 %v623, 1
        %v840 = vpop.permute.xlu0 %839
        %841 = vrot.lane.b32.xlu0 %v624, 1
        %v842 = vpop.permute.xlu0 %841
        %843 = vrot.lane.b32.xlu0 %v625, 1
        %v844 = vpop.permute.xlu0 %843
        %845 = vrot.lane.b32.xlu0 %v626, 1
        %v846 = vpop.permute.xlu0 %845
        %847 = vrot.lane.b32.xlu0 %v627, 1
        %v848 = vpop.permute.xlu0 %847
        %849 = vrot.lane.b32.xlu0 %v628, 1
        %v850 = vpop.permute.xlu0 %849
        %851 = vrot.lane.b32.xlu0 %v629, 1
        %v852 = vpop.permute.xlu0 %851
        %853 = vrot.lane.b32.xlu0 %v630, 1
        %v854 = vpop.permute.xlu0 %853
        %855 = vrot.lane.b32.xlu0 %v631, 1
        %v856 = vpop.permute.xlu0 %855
        %857 = vrot.lane.b32.xlu0 %v632, 1
        %v858 = vpop.permute.xlu0 %857
        %859 = vrot.lane.b32.xlu0 %v633, 1
        %v860 = vpop.permute.xlu0 %859
        %861 = vrot.lane.b32.xlu0 %v634, 1
        %v862 = vpop.permute.xlu0 %861
        %v863 = vmul.f32 %v840, %v209
        %v864 = vmul.f32 %v842, %v209
        %v865 = vmul.f32 %v844, %v209
        %v866 = vmul.f32 %v846, %v209
        %v867 = vmul.f32 %v848, %v209
        %v868 = vmul.f32 %v850, %v209
        %v869 = vmul.f32 %v852, %v209
        %v870 = vmul.f32 %v854, %v209
        %v871 = vmul.f32 %v856, %v209
        %v872 = vmul.f32 %v858, %v209
        %v873 = vmul.f32 %v860, %v209
        %v874 = vmul.f32 %v862, %v209
        %v875 = vsub.f32 %v827, %v863
        %v876 = vsub.f32 %v828, %v864
        %v877 = vsub.f32 %v829, %v865
        %v878 = vsub.f32 %v830, %v866
        %v879 = vsub.f32 %v831, %v867
        %v880 = vsub.f32 %v832, %v868
        %v881 = vsub.f32 %v833, %v869
        %v882 = vsub.f32 %v834, %v870
        %v883 = vsub.f32 %v835, %v871
        %v884 = vsub.f32 %v836, %v872
        %v885 = vsub.f32 %v837, %v873
        %v886 = vsub.f32 %v838, %v874
        %v887 = vrot.slane %v623, 1
        %v888 = vrot.slane %v625, 1
        %v889 = vrot.slane %v627, 1
        %v890 = vrot.slane %v629, 1
        %v891 = vrot.slane %v631, 1
        %v892 = vrot.slane %v633, 1
        %v893 = vrot.slane %v624, 1
        %v894 = vrot.slane %v626, 1
        %v895 = vrot.slane %v628, 1
        %v896 = vrot.slane %v630, 1
        %v897 = vrot.slane %v632, 1
        %v898 = vrot.slane %v634, 1
        %v899 = vsel %vm257, %v887, %v893
        %v900 = vsel %vm257, %v888, %v894
        %v901 = vsel %vm257, %v889, %v895
        %v902 = vsel %vm257, %v890, %v896
        %v903 = vsel %vm257, %v891, %v897
        %v904 = vsel %vm257, %v892, %v898
        %v905 = vsel %vm257, %v893, %v887
        %v906 = vsel %vm257, %v894, %v888
        %v907 = vsel %vm257, %v895, %v889
        %v908 = vsel %vm257, %v896, %v890
        %v909 = vsel %vm257, %v897, %v891
        %v910 = vsel %vm257, %v898, %v892
        %v911 = vmul.f32 %v899, %v217
        %v912 = vmul.f32 %v905, %v218
        %v913 = vmul.f32 %v900, %v217
        %v914 = vmul.f32 %v906, %v218
        %v915 = vmul.f32 %v901, %v217
        %v916 = vmul.f32 %v907, %v218
        %v917 = vmul.f32 %v902, %v217
        %v918 = vmul.f32 %v908, %v218
        %v919 = vmul.f32 %v903, %v217
        %v920 = vmul.f32 %v909, %v218
        %v921 = vmul.f32 %v904, %v217
        %v922 = vmul.f32 %v910, %v218
        %v923 = vrot.slane %v623, 7
        %v924 = vrot.slane %v625, 7
        %v925 = vrot.slane %v627, 7
        %v926 = vrot.slane %v629, 7
        %v927 = vrot.slane %v631, 7
        %v928 = vrot.slane %v633, 7
        %v929 = vrot.slane %v624, 7
        %v930 = vrot.slane %v626, 7
        %v931 = vrot.slane %v628, 7
        %v932 = vrot.slane %v630, 7
        %v933 = vrot.slane %v632, 7
        %v934 = vrot.slane %v634, 7
        %v935 = vsel %vm264, %v923, %v929
        %v936 = vsel %vm264, %v924, %v930
        %v937 = vsel %vm264, %v925, %v931
        %v938 = vsel %vm264, %v926, %v932
        %v939 = vsel %vm264, %v927, %v933
        %v940 = vsel %vm264, %v928, %v934
        %v941 = vsel %vm264, %v929, %v923
        %v942 = vsel %vm264, %v930, %v924
        %v943 = vsel %vm264, %v931, %v925
        %v944 = vsel %vm264, %v932, %v926
        %v945 = vsel %vm264, %v933, %v927
        %v946 = vsel %vm264, %v934, %v928
        %v947 = vmul.f32 %v941, %v223
        %v948 = vmul.f32 %v935, %v224
        %v949 = vmul.f32 %v942, %v223
        %v950 = vmul.f32 %v936, %v224
        %v951 = vmul.f32 %v943, %v223
        %v952 = vmul.f32 %v937, %v224
        %v953 = vmul.f32 %v944, %v223
        %v954 = vmul.f32 %v938, %v224
        %v955 = vmul.f32 %v945, %v223
        %v956 = vmul.f32 %v939, %v224
        %v957 = vmul.f32 %v946, %v223
        %v958 = vmul.f32 %v940, %v224
        %v959 = vsub.f32 %v911, %v947
        %v960 = vsub.f32 %v912, %v948
        %v961 = vsub.f32 %v913, %v949
        %v962 = vsub.f32 %v914, %v950
        %v963 = vsub.f32 %v915, %v951
        %v964 = vsub.f32 %v916, %v952
        %v965 = vsub.f32 %v917, %v953
        %v966 = vsub.f32 %v918, %v954
        %v967 = vsub.f32 %v919, %v955
        %v968 = vsub.f32 %v920, %v956
        %v969 = vsub.f32 %v921, %v957
        %v970 = vsub.f32 %v922, %v958
        %v971 = vmul.f32 %v707, %v707
        %v972 = vmul.f32 %v708, %v708
        %v973 = vmul.f32 %v709, %v709
        %v974 = vmul.f32 %v710, %v710
        %v975 = vmul.f32 %v711, %v711
        %v976 = vmul.f32 %v712, %v712
        %v977 = vmul.f32 %v713, %v713
        %v978 = vmul.f32 %v714, %v714
        %v979 = vmul.f32 %v715, %v715
        %v980 = vmul.f32 %v716, %v716
        %v981 = vmul.f32 %v717, %v717
        %v982 = vmul.f32 %v718, %v718
        %v983 = vmul.f32 %v562, %v562
        %v984 = vmul.f32 %v563, %v563
        %v985 = vmul.f32 %v564, %v564
        %v986 = vmul.f32 %v565, %v565
        %v987 = vmul.f32 %v566, %v566
        %v988 = vmul.f32 %v567, %v567
        %v989 = vmul.f32 %v568, %v568
        %v990 = vmul.f32 %v569, %v569
        %v991 = vmul.f32 %v570, %v570
        %v992 = vmul.f32 %v571, %v571
        %v993 = vmul.f32 %v572, %v572
        %v994 = vmul.f32 %v573, %v573
        %v995 = vadd.f32 %v971, %v983
        %v996 = vadd.f32 %v972, %v984
        %v997 = vadd.f32 %v973, %v985
        %v998 = vadd.f32 %v974, %v986
        %v999 = vadd.f32 %v975, %v987
        %v1000 = vadd.f32 %v976, %v988
        %v1001 = vadd.f32 %v977, %v989
        %v1002 = vadd.f32 %v978, %v990
        %v1003 = vadd.f32 %v979, %v991
        %v1004 = vadd.f32 %v980, %v992
        %v1005 = vadd.f32 %v981, %v993
        %v1006 = vadd.f32 %v982, %v994
        %v1007 = vmul.f32 %v791, %v791
        %v1008 = vmul.f32 %v792, %v792
        %v1009 = vmul.f32 %v793, %v793
        %v1010 = vmul.f32 %v794, %v794
        %v1011 = vmul.f32 %v795, %v795
        %v1012 = vmul.f32 %v796, %v796
        %v1013 = vmul.f32 %v797, %v797
        %v1014 = vmul.f32 %v798, %v798
        %v1015 = vmul.f32 %v799, %v799
        %v1016 = vmul.f32 %v800, %v800
        %v1017 = vmul.f32 %v801, %v801
        %v1018 = vmul.f32 %v802, %v802
        %v1019 = vadd.f32 %v995, %v1007
        %v1020 = vadd.f32 %v996, %v1008
        %v1021 = vadd.f32 %v997, %v1009
        %v1022 = vadd.f32 %v998, %v1010
        %v1023 = vadd.f32 %v999, %v1011
        %v1024 = vadd.f32 %v1000, %v1012
        %v1025 = vadd.f32 %v1001, %v1013
        %v1026 = vadd.f32 %v1002, %v1014
        %v1027 = vadd.f32 %v1003, %v1015
        %v1028 = vadd.f32 %v1004, %v1016
        %v1029 = vadd.f32 %v1005, %v1017
        %v1030 = vadd.f32 %v1006, %v1018
        %v1031 = vmul.f32 %v875, %v875
        %v1032 = vmul.f32 %v876, %v876
        %v1033 = vmul.f32 %v877, %v877
        %v1034 = vmul.f32 %v878, %v878
        %v1035 = vmul.f32 %v879, %v879
        %v1036 = vmul.f32 %v880, %v880
        %v1037 = vmul.f32 %v881, %v881
        %v1038 = vmul.f32 %v882, %v882
        %v1039 = vmul.f32 %v883, %v883
        %v1040 = vmul.f32 %v884, %v884
        %v1041 = vmul.f32 %v885, %v885
        %v1042 = vmul.f32 %v886, %v886
        %v1043 = vmul.f32 %v599, %v599
        %v1044 = vmul.f32 %v600, %v600
        %v1045 = vmul.f32 %v601, %v601
        %v1046 = vmul.f32 %v602, %v602
        %v1047 = vmul.f32 %v603, %v603
        %v1048 = vmul.f32 %v604, %v604
        %v1049 = vmul.f32 %v605, %v605
        %v1050 = vmul.f32 %v606, %v606
        %v1051 = vmul.f32 %v607, %v607
        %v1052 = vmul.f32 %v608, %v608
        %v1053 = vmul.f32 %v609, %v609
        %v1054 = vmul.f32 %v610, %v610
        %v1055 = vadd.f32 %v1031, %v1043
        %v1056 = vadd.f32 %v1032, %v1044
        %v1057 = vadd.f32 %v1033, %v1045
        %v1058 = vadd.f32 %v1034, %v1046
        %v1059 = vadd.f32 %v1035, %v1047
        %v1060 = vadd.f32 %v1036, %v1048
        %v1061 = vadd.f32 %v1037, %v1049
        %v1062 = vadd.f32 %v1038, %v1050
        %v1063 = vadd.f32 %v1039, %v1051
        %v1064 = vadd.f32 %v1040, %v1052
        %v1065 = vadd.f32 %v1041, %v1053
        %v1066 = vadd.f32 %v1042, %v1054
        %v1067 = vmul.f32 %v959, %v959
        %v1068 = vmul.f32 %v960, %v960
        %v1069 = vmul.f32 %v961, %v961
        %v1070 = vmul.f32 %v962, %v962
        %v1071 = vmul.f32 %v963, %v963
        %v1072 = vmul.f32 %v964, %v964
        %v1073 = vmul.f32 %v965, %v965
        %v1074 = vmul.f32 %v966, %v966
        %v1075 = vmul.f32 %v967, %v967
        %v1076 = vmul.f32 %v968, %v968
        %v1077 = vmul.f32 %v969, %v969
        %v1078 = vmul.f32 %v970, %v970
        %v1079 = vadd.f32 %v1055, %v1067
        %v1080 = vadd.f32 %v1056, %v1068
        %v1081 = vadd.f32 %v1057, %v1069
        %v1082 = vadd.f32 %v1058, %v1070
        %v1083 = vadd.f32 %v1059, %v1071
        %v1084 = vadd.f32 %v1060, %v1072
        %v1085 = vadd.f32 %v1061, %v1073
        %v1086 = vadd.f32 %v1062, %v1074
        %v1087 = vadd.f32 %v1063, %v1075
        %v1088 = vadd.f32 %v1064, %v1076
        %v1089 = vadd.f32 %v1065, %v1077
        %v1090 = vadd.f32 %v1066, %v1078
        %v1091 = vmul.f32 %v707, %v875
        %v1092 = vmul.f32 %v708, %v876
        %v1093 = vmul.f32 %v709, %v877
        %v1094 = vmul.f32 %v710, %v878
        %v1095 = vmul.f32 %v711, %v879
        %v1096 = vmul.f32 %v712, %v880
        %v1097 = vmul.f32 %v713, %v881
        %v1098 = vmul.f32 %v714, %v882
        %v1099 = vmul.f32 %v715, %v883
        %v1100 = vmul.f32 %v716, %v884
        %v1101 = vmul.f32 %v717, %v885
        %v1102 = vmul.f32 %v718, %v886
        %v1103 = vmul.f32 %v562, %v599
        %v1104 = vmul.f32 %v563, %v600
        %v1105 = vmul.f32 %v564, %v601
        %v1106 = vmul.f32 %v565, %v602
        %v1107 = vmul.f32 %v566, %v603
        %v1108 = vmul.f32 %v567, %v604
        %v1109 = vmul.f32 %v568, %v605
        %v1110 = vmul.f32 %v569, %v606
        %v1111 = vmul.f32 %v570, %v607
        %v1112 = vmul.f32 %v571, %v608
        %v1113 = vmul.f32 %v572, %v609
        %v1114 = vmul.f32 %v573, %v610
        %v1115 = vadd.f32 %v1091, %v1103
        %v1116 = vadd.f32 %v1092, %v1104
        %v1117 = vadd.f32 %v1093, %v1105
        %v1118 = vadd.f32 %v1094, %v1106
        %v1119 = vadd.f32 %v1095, %v1107
        %v1120 = vadd.f32 %v1096, %v1108
        %v1121 = vadd.f32 %v1097, %v1109
        %v1122 = vadd.f32 %v1098, %v1110
        %v1123 = vadd.f32 %v1099, %v1111
        %v1124 = vadd.f32 %v1100, %v1112
        %v1125 = vadd.f32 %v1101, %v1113
        %v1126 = vadd.f32 %v1102, %v1114
        %v1127 = vmul.f32 %v791, %v959
        %v1128 = vmul.f32 %v792, %v960
        %v1129 = vmul.f32 %v793, %v961
        %v1130 = vmul.f32 %v794, %v962
        %v1131 = vmul.f32 %v795, %v963
        %v1132 = vmul.f32 %v796, %v964
        %v1133 = vmul.f32 %v797, %v965
        %v1134 = vmul.f32 %v798, %v966
        %v1135 = vmul.f32 %v799, %v967
        %v1136 = vmul.f32 %v800, %v968
        %v1137 = vmul.f32 %v801, %v969
        %v1138 = vmul.f32 %v802, %v970
        %v1139 = vadd.f32 %v1115, %v1127
        %v1140 = vadd.f32 %v1116, %v1128
        %v1141 = vadd.f32 %v1117, %v1129
        %v1142 = vadd.f32 %v1118, %v1130
        %v1143 = vadd.f32 %v1119, %v1131
        %v1144 = vadd.f32 %v1120, %v1132
        %v1145 = vadd.f32 %v1121, %v1133
        %v1146 = vadd.f32 %v1122, %v1134
        %v1147 = vadd.f32 %v1123, %v1135
        %v1148 = vadd.f32 %v1124, %v1136
        %v1149 = vadd.f32 %v1125, %v1137
        %v1150 = vadd.f32 %v1126, %v1138
        %v1151 = vadd.f32 %v1019, 4e-16
        %v1152 = vadd.f32 %v1020, 4e-16
        %v1153 = vadd.f32 %v1021, 4e-16
        %v1154 = vadd.f32 %v1022, 4e-16
        %v1155 = vadd.f32 %v1023, 4e-16
        %v1156 = vadd.f32 %v1024, 4e-16
        %v1157 = vadd.f32 %v1025, 4e-16
        %v1158 = vadd.f32 %v1026, 4e-16
        %v1159 = vadd.f32 %v1027, 4e-16
        %v1160 = vadd.f32 %v1028, 4e-16
        %v1161 = vadd.f32 %v1029, 4e-16
        %v1162 = vadd.f32 %v1030, 4e-16
        %v1163 = vrsqrt.pop %v1151
        %v1164 = vrsqrt.pop %v1152
        %v1165 = vrsqrt.pop %v1153
        %v1166 = vrsqrt.pop %v1154
        %v1167 = vrsqrt.pop %v1155
        %v1168 = vrsqrt.pop %v1156
        %v1169 = vrsqrt.pop %v1157
        %v1170 = vrsqrt.pop %v1158
        %v1171 = vrsqrt.pop %v1159
        %v1172 = vrsqrt.pop %v1160
        %v1173 = vrsqrt.pop %v1161
        %v1174 = vrsqrt.pop %v1162
        %v1175 = vadd.f32 %v1079, 4e-16
        %v1176 = vadd.f32 %v1080, 4e-16
        %v1177 = vadd.f32 %v1081, 4e-16
        %v1178 = vadd.f32 %v1082, 4e-16
        %v1179 = vadd.f32 %v1083, 4e-16
        %v1180 = vadd.f32 %v1084, 4e-16
        %v1181 = vadd.f32 %v1085, 4e-16
        %v1182 = vadd.f32 %v1086, 4e-16
        %v1183 = vadd.f32 %v1087, 4e-16
        %v1184 = vadd.f32 %v1088, 4e-16
        %v1185 = vadd.f32 %v1089, 4e-16
        %v1186 = vadd.f32 %v1090, 4e-16
        %v1187 = vrsqrt.pop %v1175
        %v1188 = vrsqrt.pop %v1176
        %v1189 = vrsqrt.pop %v1177
        %v1190 = vrsqrt.pop %v1178
        %v1191 = vrsqrt.pop %v1179
        %v1192 = vrsqrt.pop %v1180
        %v1193 = vrsqrt.pop %v1181
        %v1194 = vrsqrt.pop %v1182
        %v1195 = vrsqrt.pop %v1183
        %v1196 = vrsqrt.pop %v1184
        %v1197 = vrsqrt.pop %v1185
        %v1198 = vrsqrt.pop %v1186
        %v1199 = vmul.f32 %v1019, %v1163
        %v1200 = vmul.f32 %v1020, %v1164
        %v1201 = vmul.f32 %v1021, %v1165
        %v1202 = vmul.f32 %v1022, %v1166
        %v1203 = vmul.f32 %v1023, %v1167
        %v1204 = vmul.f32 %v1024, %v1168
        %v1205 = vmul.f32 %v1025, %v1169
        %v1206 = vmul.f32 %v1026, %v1170
        %v1207 = vmul.f32 %v1027, %v1171
        %v1208 = vmul.f32 %v1028, %v1172
        %v1209 = vmul.f32 %v1029, %v1173
        %v1210 = vmul.f32 %v1030, %v1174
        %v1211 = vmul.f32 %v1199, 0.5
        %v1212 = vmul.f32 %v1200, 0.5
        %v1213 = vmul.f32 %v1201, 0.5
        %v1214 = vmul.f32 %v1202, 0.5
        %v1215 = vmul.f32 %v1203, 0.5
        %v1216 = vmul.f32 %v1204, 0.5
        %v1217 = vmul.f32 %v1205, 0.5
        %v1218 = vmul.f32 %v1206, 0.5
        %v1219 = vmul.f32 %v1207, 0.5
        %v1220 = vmul.f32 %v1208, 0.5
        %v1221 = vmul.f32 %v1209, 0.5
        %v1222 = vmul.f32 %v1210, 0.5
        %v1223 = vsub.f32 %v1211, 1.0
        %v1224 = vsub.f32 %v1212, 1.0
        %v1225 = vsub.f32 %v1213, 1.0
        %v1226 = vsub.f32 %v1214, 1.0
        %v1227 = vsub.f32 %v1215, 1.0
        %v1228 = vsub.f32 %v1216, 1.0
        %v1229 = vsub.f32 %v1217, 1.0
        %v1230 = vsub.f32 %v1218, 1.0
        %v1231 = vsub.f32 %v1219, 1.0
        %v1232 = vsub.f32 %v1220, 1.0
        %v1233 = vsub.f32 %v1221, 1.0
        %v1234 = vsub.f32 %v1222, 1.0
        %v1235 = vmul.f32 %v1223, %v1223
        %v1236 = vmul.f32 %v1224, %v1224
        %v1237 = vmul.f32 %v1225, %v1225
        %v1238 = vmul.f32 %v1226, %v1226
        %v1239 = vmul.f32 %v1227, %v1227
        %v1240 = vmul.f32 %v1228, %v1228
        %v1241 = vmul.f32 %v1229, %v1229
        %v1242 = vmul.f32 %v1230, %v1230
        %v1243 = vmul.f32 %v1231, %v1231
        %v1244 = vmul.f32 %v1232, %v1232
        %v1245 = vmul.f32 %v1233, %v1233
        %v1246 = vmul.f32 %v1234, %v1234
        %v1247 = vmul.f32 %v1163, %v1187
        %v1248 = vmul.f32 %v1164, %v1188
        %v1249 = vmul.f32 %v1165, %v1189
        %v1250 = vmul.f32 %v1166, %v1190
        %v1251 = vmul.f32 %v1167, %v1191
        %v1252 = vmul.f32 %v1168, %v1192
        %v1253 = vmul.f32 %v1169, %v1193
        %v1254 = vmul.f32 %v1170, %v1194
        %v1255 = vmul.f32 %v1171, %v1195
        %v1256 = vmul.f32 %v1172, %v1196
        %v1257 = vmul.f32 %v1173, %v1197
        %v1258 = vmul.f32 %v1174, %v1198
        %v1259 = vmul.f32 %v1139, %v1247
        %v1260 = vmul.f32 %v1140, %v1248
        %v1261 = vmul.f32 %v1141, %v1249
        %v1262 = vmul.f32 %v1142, %v1250
        %v1263 = vmul.f32 %v1143, %v1251
        %v1264 = vmul.f32 %v1144, %v1252
        %v1265 = vmul.f32 %v1145, %v1253
        %v1266 = vmul.f32 %v1146, %v1254
        %v1267 = vmul.f32 %v1147, %v1255
        %v1268 = vmul.f32 %v1148, %v1256
        %v1269 = vmul.f32 %v1149, %v1257
        %v1270 = vmul.f32 %v1150, %v1258
        %v1271 = vand.u32 2147483647, %v623
        %v1272 = vand.u32 2147483647, %v624
        %v1273 = vand.u32 2147483647, %v625
        %v1274 = vand.u32 2147483647, %v626
        %v1275 = vand.u32 2147483647, %v627
        %v1276 = vand.u32 2147483647, %v628
        %v1277 = vand.u32 2147483647, %v629
        %v1278 = vand.u32 2147483647, %v630
        %v1279 = vand.u32 2147483647, %v631
        %v1280 = vand.u32 2147483647, %v632
        %v1281 = vand.u32 2147483647, %v633
        %v1282 = vand.u32 2147483647, %v634
        %vm1283 = vcmp.lt.f32.partialorder %v1271, 2.0
        %vm1284 = vcmp.lt.f32.partialorder %v1272, 2.0
        %vm1285 = vcmp.lt.f32.partialorder %v1273, 2.0
        %vm1286 = vcmp.lt.f32.partialorder %v1274, 2.0
        %vm1287 = vcmp.lt.f32.partialorder %v1275, 2.0
        %vm1288 = vcmp.lt.f32.partialorder %v1276, 2.0
        %vm1289 = vcmp.lt.f32.partialorder %v1277, 2.0
        %vm1290 = vcmp.lt.f32.partialorder %v1278, 2.0
        %vm1291 = vcmp.lt.f32.partialorder %v1279, 2.0
        %vm1292 = vcmp.lt.f32.partialorder %v1280, 2.0
        %vm1293 = vcmp.lt.f32.partialorder %v1281, 2.0
        %vm1294 = vcmp.lt.f32.partialorder %v1282, 2.0
        %v1295 = vsel %vm1283, 1, 0
        %v1296 = vsel %vm1284, 1, 0
        %v1297 = vsel %vm1285, 1, 0
        %v1298 = vsel %vm1286, 1, 0
        %v1299 = vsel %vm1287, 1, 0
        %v1300 = vsel %vm1288, 1, 0
        %v1301 = vsel %vm1289, 1, 0
        %v1302 = vsel %vm1290, 1, 0
        %v1303 = vsel %vm1291, 1, 0
        %v1304 = vsel %vm1292, 1, 0
        %v1305 = vsel %vm1293, 1, 0
        %v1306 = vsel %vm1294, 1, 0
        %v1307 = vcvt.s32.f32 %v1295
        %v1308 = vcvt.s32.f32 %v1296
        %v1309 = vcvt.s32.f32 %v1297
        %v1310 = vcvt.s32.f32 %v1298
        %v1311 = vcvt.s32.f32 %v1299
        %v1312 = vcvt.s32.f32 %v1300
        %v1313 = vcvt.s32.f32 %v1301
        %v1314 = vcvt.s32.f32 %v1302
        %v1315 = vcvt.s32.f32 %v1303
        %v1316 = vcvt.s32.f32 %v1304
        %v1317 = vcvt.s32.f32 %v1305
        %v1318 = vcvt.s32.f32 %v1306
        %v1319 = vld [vmem:[%s201] sm:$0xff]
        %v1320 = vld [vmem:[%s201 + $0x8] sm:$0xff]
        %v1321 = vadd.f32 %v1235, %v1237
        %v1322 = vadd.f32 %v1321, %v1239
        %v1323 = vadd.f32 %v1322, %v1241
        %v1324 = vadd.f32 %v1323, %v1243
        %v1325 = vadd.f32 %v1324, %v1245
        %v1326 = vadd.f32 %v1236, %v1238
        %v1327 = vadd.f32 %v1326, %v1240
        %v1328 = vadd.f32 %v1327, %v1242
        %v1329 = vadd.f32 %v1328, %v1244
        %v1330 = vadd.f32 %v1329, %v1246
        %v1331 = vadd.f32 %v1319, %v1325
        %v1332 = vadd.f32 %v1320, %v1330
        %1333 = vst [vmem:[%s201] sm:$0xff] %v1331
        %1334 = vst [vmem:[%s201 + $0x8] sm:$0xff] %v1332
        %v1335 = vld [vmem:[%s365] sm:$0xff]
        %v1336 = vld [vmem:[%s365 + $0x8] sm:$0xff]
        %v1337 = vmul.f32 %v1259, %v1307
        %v1338 = vmul.f32 %v1260, %v1308
        %v1339 = vmul.f32 %v1261, %v1309
        %v1340 = vmul.f32 %v1262, %v1310
        %v1341 = vmul.f32 %v1263, %v1311
        %v1342 = vmul.f32 %v1264, %v1312
        %v1343 = vmul.f32 %v1265, %v1313
        %v1344 = vmul.f32 %v1266, %v1314
        %v1345 = vmul.f32 %v1267, %v1315
        %v1346 = vmul.f32 %v1268, %v1316
        %v1347 = vmul.f32 %v1269, %v1317
        %v1348 = vmul.f32 %v1270, %v1318
        %v1349 = vadd.f32 %v1337, %v1339
        %v1350 = vadd.f32 %v1349, %v1341
        %v1351 = vadd.f32 %v1350, %v1343
        %v1352 = vadd.f32 %v1351, %v1345
        %v1353 = vadd.f32 %v1352, %v1347
        %v1354 = vadd.f32 %v1338, %v1340
        %v1355 = vadd.f32 %v1354, %v1342
        %v1356 = vadd.f32 %v1355, %v1344
        %v1357 = vadd.f32 %v1356, %v1346
        %v1358 = vadd.f32 %v1357, %v1348
        %v1359 = vadd.f32 %v1335, %v1353
        %v1360 = vadd.f32 %v1336, %v1358
        %1361 = vst [vmem:[%s365] sm:$0xff] %v1359
        %1362 = vst [vmem:[%s365 + $0x8] sm:$0xff] %v1360
        %v1363 = vld [vmem:[%s376] sm:$0xff]
        %v1364 = vld [vmem:[%s376 + $0x8] sm:$0xff]
        %v1365 = vadd.f32 %v1307, %v1309
        %v1366 = vadd.f32 %v1365, %v1311
        %v1367 = vadd.f32 %v1366, %v1313
        %v1368 = vadd.f32 %v1367, %v1315
        %v1369 = vadd.f32 %v1368, %v1317
        %v1370 = vadd.f32 %v1308, %v1310
        %v1371 = vadd.f32 %v1370, %v1312
        %v1372 = vadd.f32 %v1371, %v1314
        %v1373 = vadd.f32 %v1372, %v1316
        %v1374 = vadd.f32 %v1373, %v1318
        %v1375 = vadd.f32 %v1363, %v1369
        %v1376 = vadd.f32 %v1364, %v1374
        %1377 = vst [vmem:[%s376] sm:$0xff] %v1375
        %1378 = vst [vmem:[%s376 + $0x8] sm:$0xff] %v1376
        %s1379 = sand.u32 %s82, 1
        %s1380 = scalar_lea.sflag [#allocation4], %s1379
        %s1381 = sand.u32 %s82, 1
        %s1382 = smul.addr %s1381, 48
        %s1383 = scalar_lea.vmem [#allocation7], %s1382
        // Predicated region
        $region37: #{tpu_custom_call.1} parent=27 // pred_check
          %p1384 = pneg %p92
        $region38: #{tpu_custom_call.1} parent=27 // pred_check_branch
          %1386 = sbr.rel (%p1384) target = $region40
        $region39: #{tpu_custom_call.1} parent=27 // pred_region
          %s1388 = ssub.s32 768, 768
          %1389 = vsyncadd %s1380, %s1388
          %s1390 = smul.addr %s22, 6
          %s1391 = smul.addr %s1390, 128
          %s1392 = scalar_lea.hbm %s2, %s1391
          %s1393 = sshll.u32 %s1383, 4
          %s1394 = int_to_ptr.vmem [resolvable:$true] %s1393
          %1399 = dma.vmem_to_hbm [thread:$0]  %s1394, 768, %s1392, %s1380, 128, 128, 8
        $region40: #{tpu_custom_call.1} parent=27 // pred_fallthru
          _
      $region28: #{tpu_custom_call.1} parent=5 // pred_fallthru
        _
      %p1400 = scmp.le.s32.totalorder 2, %s17
      // Predicated region
      $region41: #{tpu_custom_call.1} parent=5 // pred_check
        %p1401 = pneg %p1400
      $region42: #{tpu_custom_call.1} parent=5 // pred_check_branch
        %1403 = sbr.rel (%p1401) target = $region44
      $region43: #{tpu_custom_call.1} parent=5 // pred_region
        %s1404 = ssub.s32 %s17, 2
        // Predicated region
        $region45: #{tpu_custom_call.1} parent=43 // pred_check
          %p1405 = pneg %p98
        $region46: #{tpu_custom_call.1} parent=43 // pred_check_branch
          %1407 = sbr.rel (%p1405) target = $region48
        $region47: #{tpu_custom_call.1} parent=43 // pred_region
          %s1408 = sand.u32 %s83, 1
          %s1409 = scalar_lea.sflag [#allocation4], %s1408
          %s1410 = sand.u32 %s83, 1
          %s1411 = smul.addr %s1410, 48
          %s1412 = scalar_lea.vmem [#allocation7], %s1411
          %1413 = dma.done %s1409, 768
        $region48: #{tpu_custom_call.1} parent=43 // pred_fallthru
          _
      $region44: #{tpu_custom_call.1} parent=5 // pred_fallthru
        _
    $region6: #{tpu_custom_call.1} parent=1 // loop_footer
      %s21 = sadd.s32 1, %s17
    $region7: #{tpu_custom_call.1} parent=1 // loop_footer_branch
      %16 = sbr.rel target = $region3
    $region8: #{tpu_custom_call.1} parent=1 // loop_exit
      _
    %1414 = vsyncpa [#allocation3], 1
    %s1415 = scalar_lea.sflag [#allocation3], 1
    %1416 = vsyncpa %s1415, 1
    %1417 = vsyncpa [#allocation6], 1
    %s1418 = scalar_lea.sflag [#allocation6], 1
    %1419 = vsyncpa %s1418, 1
    %1420 = vsyncpa [#allocation4], 1
    %s1421 = scalar_lea.sflag [#allocation4], 1
    %1422 = vsyncpa %s1421, 1

</llo_original>
